<compile_context>
chip_gen: v7x
topology: tpu7x:2x2x1
jax: 0.10.0
libtpu: 0.0.40
codegen_flags: <defaults>
</compile_context>

<pallas_src>
import jax
import jax.numpy as jnp
from jax.experimental import pallas as pl
from jax.experimental.pallas import tpu as pltpu

PAD = 8          # halo rows; 8 keeps the padded regions (8,128)-tile aligned
N_REGIONS = 4    # padded regions per image: x (for conv0), h0, h1, h2

# Tap-table row offsets (static).
_OFF_C0 = 0                 # rows 0..24 : 5x5 conv, row = i*5 + j
_OFF_H = (25, 32, 43)       # horizontal (1,K) taps, K = 7, 11, 15
_OFF_V = (58, 65, 76)       # vertical   (K,1) taps, K = 7, 11, 15
_KS = (7, 11, 15)
_N_TAP_ROWS = 96            # 91 used, padded to a multiple of 8

# Bias-table rows.
_B_C0, _B_H0, _B_H1, _B_H2, _B_VSUM, _B_3 = 0, 1, 2, 3, 4, 5
_N_BIAS_ROWS = 8


# --------------------------------------------------------------------------
# Kernel
# --------------------------------------------------------------------------
def _make_kernel(C, H, W, Bt):
    WC = W * C
    HP = H + 2 * PAD

    def region_base(r, im):
        # Every region starts at a multiple of HP (multiple of 8) rows.
        return (r * Bt + im) * HP

    def kernel(x_ref, taps_ref, bias_ref, w3_ref, o_ref, pad_ref):
        # ---- zero the halo rows of every padded region (full 8x128 tiles).
        # Interiors are always fully overwritten before being read, so only
        # the halos need clearing; done every step so it is safe however the
        # batch grid is split across TensorCores.
        halo = jnp.zeros((PAD, WC), jnp.float32)
        for r in range(N_REGIONS):
            for im in range(Bt):
                base = region_base(r, im)
                pad_ref[base:base + PAD, :] = halo
                pad_ref[base + PAD + H:base + HP, :] = halo

        def brow(row):
            return jnp.broadcast_to(bias_ref[row, :], (H, WC))

        xs, totals = [], []
        for im in range(Bt):
            x = x_ref[im].astype(jnp.float32)               # (H, WC); u = x
            xs.append(x)

            # ---- conv0: 5x5 depthwise.  H taps via padded-window reads,
            #      W taps via lane rolls with border-masked weights; bias is
            #      folded into the accumulator init.  Two accumulators break
            #      the 25-tap add chain. ---------------------------------
            base0 = region_base(0, im)
            pad_ref[base0 + PAD:base0 + PAD + H, :] = x
            acc_a = brow(_B_C0)
            acc_b = jnp.zeros((H, WC), jnp.float32)
            for i in range(5):
                lo = base0 + PAD - 2 + i
                row = pad_ref[lo:lo + H, :]
                for j in range(5):
                    dw = j - 2
                    shift = (-dw * C) % WC
                    r = row if shift == 0 else pltpu.roll(row, shift, axis=1)
                    t = r * taps_ref[_OFF_C0 + i * 5 + j, :]
                    if (i + j) % 2 == 0:
                        acc_a = acc_a + t
                    else:
                        acc_b = acc_b + t
            attn = acc_a + acc_b

            # ---- horizontal (1,K) convs, K = 7/11/15: ONE lane roll per dw,
            #      shared by all three branches (14 rolls instead of 30).
            #      W-border zero padding is baked into the tap weights;
            #      branch biases are folded into the accumulator inits. ----
            h = [brow(_B_H0), brow(_B_H1), brow(_B_H2)]
            for dw in range(-7, 8):
                shift = (-dw * C) % WC
                r = attn if shift == 0 else pltpu.roll(attn, shift, axis=1)
                for b in range(3):
                    half = _KS[b] // 2
                    if abs(dw) <= half:
                        h[b] = h[b] + r * taps_ref[_OFF_H[b] + dw + half, :]

            # ---- vertical (K,1) convs: each branch writes its OWN padded
            #      region (no WAR hazard between branches), then window reads
            #      provide the H shifts with zero padding from the halo. ----
            for b in range(3):
                base = region_base(1 + b, im)
                pad_ref[base + PAD:base + PAD + H, :] = h[b]
            v = []
            for b in range(3):
                base = region_base(1 + b, im)
                half = _KS[b] // 2
                acc = jnp.zeros((H, WC), jnp.float32)
                for i in range(_KS[b]):
                    lo = base + PAD - half + i
                    acc = acc + pad_ref[lo:lo + H, :] * taps_ref[_OFF_V[b] + i, :]
                v.append(acc)

            # attn + branch0 + branch1 + branch2, vertical biases pre-summed
            totals.append(attn + brow(_B_VSUM) + v[0] + v[1] + v[2])

        # ---- conv3: 1x1 channel mix as one lane-dense block-diagonal MXU
        #      matmul over the whole (Bt*H, WC) block, then gate with u = x.
        total = totals[0] if Bt == 1 else jnp.concatenate(totals, axis=0)
        mixed = jnp.dot(total, w3_ref[...], preferred_element_type=jnp.float32)
        mixed = mixed + bias_ref[_B_3, :]

        x_all = xs[0] if Bt == 1 else jnp.concatenate(xs, axis=0)
        o_ref[...] = (mixed * x_all).reshape(Bt, H, WC).astype(o_ref.dtype)

    return kernel


# --------------------------------------------------------------------------
# Parameter packing: torch layouts -> 3 lane-expanded constant tables
# --------------------------------------------------------------------------
def _pack_params(tparams, W):
    (w0, b0, w01, b01, w02, b02, w11, b11, w12, b12,
     w21, b21, w22, b22, w3, b3) = tparams
    C = w0.shape[0]
    WC = W * C
    w_idx = jnp.arange(WC) // C                              # lane -> spatial w

    def mask_w(K):
        dw = jnp.arange(K) - (K // 2)
        pos = w_idx[None, :] + dw[:, None]
        return ((pos >= 0) & (pos < W)).astype(jnp.float32)  # (K, WC)

    def pack_h(w, K):   # (C,1,1,K) -> (K, WC); W-border folded into zero taps
        base = jnp.transpose(w[:, 0, 0, :], (1, 0))          # (K, C)
        return jnp.tile(base, (1, W)) * mask_w(K)

    def pack_v(w, K):   # (C,1,K,1) -> (K, WC)
        base = jnp.transpose(w[:, 0, :, 0], (1, 0))          # (K, C)
        return jnp.tile(base, (1, W))

    def pack_55(w):     # (C,1,5,5) -> (25, WC); W-border folded into zero taps
        base = jnp.transpose(w[:, 0, :, :], (1, 2, 0))       # (5, 5, C)
        tiled = jnp.tile(base, (1, 1, W))                    # (5, 5, WC)
        return (tiled * mask_w(5)[None, :, :]).reshape(25, WC)

    def lane(b):        # (C,) -> (WC,)
        return jnp.tile(b, W)

    taps = jnp.concatenate([
        pack_55(w0),
        pack_h(w01, 7), pack_h(w11, 11), pack_h(w21, 15),
        pack_v(w02, 7), pack_v(w12, 11), pack_v(w22, 15),
        jnp.zeros((_N_TAP_ROWS - 91, WC), jnp.float32),
    ], axis=0)

    biases = jnp.stack([
        lane(b0), lane(b01), lane(b11), lane(b21),
        lane(b02 + b12 + b22), lane(b3),
        jnp.zeros((WC,), jnp.float32), jnp.zeros((WC,), jnp.float32),
    ], axis=0)

    # 1x1 conv -> block-diagonal (WC, WC) channel-mix matrix (W copies of
    # the CxC weight on the diagonal).  Fine at WC=128; do not let this grow
    # with W when scaling (tile W via the grid instead).
    w3bd = jnp.kron(jnp.eye(W, dtype=w3.dtype), w3[:, :, 0, 0].T)

    return taps, biases, w3bd


# --------------------------------------------------------------------------
# Wrapper (NCHW in / NCHW out, torch-layout parameters)
# --------------------------------------------------------------------------
def tdatt_pallas(x_nchw, tparams, batch_block=None):
    """x_nchw: (B, C, H, W) float32; torch-layout params; returns (B, C, H, W)."""
    B, C, H, W = x_nchw.shape
    WC = W * C
    if WC % 128 != 0:
        raise NotImplementedError(
            "tdatt_pallas folds (W, C) onto the 128-lane axis; W*C must be a "
            f"multiple of 128 (got {WC}).")

    if batch_block is None:
        # Default keeps >= 2 grid steps so both v7x TensorCores get work.
        # On single-TC v5e/v6e pass batch_block=B: per-step pipeline overhead
        # (~0.35us) dominates at this size, so folding halves wall time.
        batch_block = 1 if B < 2 else B // 2
        while batch_block > 1 and B % batch_block:
            batch_block -= 1
    Bt = max(1, min(int(batch_block), B))
    if B % Bt:
        raise ValueError(f"batch_block={Bt} must divide batch size B={B}")

    # NCHW -> (B, H, W*C): channels+width folded onto the lane axis.
    # (In a full NHWC model these transposes would be elided.)
    x = jnp.transpose(x_nchw, (0, 2, 3, 1)).reshape(B, H, WC)
    taps, biases, w3bd = _pack_params(tparams, W)

    HP = H + 2 * PAD

    def const_spec(shape):
        return pl.BlockSpec(shape, lambda b: (0, 0))

    out = pl.pallas_call(
        _make_kernel(C, H, W, Bt),
        out_shape=jax.ShapeDtypeStruct((B, H, WC), x.dtype),
        grid=(B // Bt,),
        in_specs=[
            pl.BlockSpec((Bt, H, WC), lambda b: (b, 0, 0)),
            const_spec((_N_TAP_ROWS, WC)),
            const_spec((_N_BIAS_ROWS, WC)),
            const_spec((WC, WC)),
        ],
        out_specs=pl.BlockSpec((Bt, H, WC), lambda b: (b, 0, 0)),
        scratch_shapes=[
            # 4 zero-halo padded regions per image in the block, all
            # (8,128)-tile aligned (region stride HP is a multiple of 8).
            pltpu.VMEM((N_REGIONS * Bt * HP, WC), jnp.float32),
        ],
        compiler_params=pltpu.CompilerParams(
            dimension_semantics=("parallel",)),
    )(x, taps, biases, w3bd)

    return jnp.transpose(out.reshape(B, H, W, C), (0, 3, 1, 2))


# ---------------- reference (plain JAX, torch-conv semantics) ----------------
def _ref_dwconv(x, w, b, pad):
    # x: (B, C, H, W), w: (C, 1, kh, kw) torch layout, groups=C
    out = jax.lax.conv_general_dilated(
        x, w, window_strides=(1, 1),
        padding=((pad[0], pad[0]), (pad[1], pad[1])),
        dimension_numbers=("NCHW", "OIHW", "NCHW"),
        feature_group_count=x.shape[1])
    return out + b[None, :, None, None]


def tdatt_reference(x, tparams):
    (w0, b0, w01, b01, w02, b02, w11, b11, w12, b12,
     w21, b21, w22, b22, w3, b3) = tparams
    u = x
    attn = _ref_dwconv(x, w0, b0, (2, 2))
    a0 = _ref_dwconv(attn, w01, b01, (0, 3))
    a0 = _ref_dwconv(a0, w02, b02, (3, 0))
    a1 = _ref_dwconv(attn, w11, b11, (0, 5))
    a1 = _ref_dwconv(a1, w12, b12, (5, 0))
    a2 = _ref_dwconv(attn, w21, b21, (0, 7))
    a2 = _ref_dwconv(a2, w22, b22, (7, 0))
    attn = attn + a0 + a1 + a2
    attn = jax.lax.conv_general_dilated(
        attn, w3, window_strides=(1, 1), padding="VALID",
        dimension_numbers=("NCHW", "OIHW", "NCHW"),
        feature_group_count=1) + b3[None, :, None, None]
    return attn * u


# ---------------- deterministic parameter construction -----------------------
def make_params(key, dim):
    """Returns torch-layout parameters matching the PyTorch module."""
    sizes = [(5, 5), (1, 7), (7, 1), (1, 11), (11, 1), (1, 15), (15, 1)]
    tparams = []
    keys = jax.random.split(key, 2 * len(sizes) + 2)
    ki = 0
    for (kh, kw) in sizes:
        w = 0.1 * jax.random.normal(keys[ki], (dim, 1, kh, kw), jnp.float32)
        ki += 1
        b = 0.1 * jax.random.normal(keys[ki], (dim,), jnp.float32)
        ki += 1
        tparams += [w, b]
    w3 = 0.1 * jax.random.normal(keys[ki], (dim, dim, 1, 1), jnp.float32)
    ki += 1
    b3 = 0.1 * jax.random.normal(keys[ki], (dim,), jnp.float32)
    tparams += [w3, b3]
    return tuple(tparams)


if __name__ == "__main__":
    # W * C = 128 -> exactly one full lane row per image row (lane-dense).
    B, C, H, W = 2, 8, 16, 16
    key = jax.random.PRNGKey(0)
    kx, kp = jax.random.split(key)
    x = jax.random.normal(kx, (B, C, H, W), jnp.float32)
    tparams = make_params(kp, C)

    ref = jax.block_until_ready(tdatt_reference(x, tparams))

    # Default: 2 "parallel" grid steps (keeps both v7x TensorCores busy).
    out = jax.block_until_ready(tdatt_pallas(x, tparams))
    assert out.shape == (B, C, H, W)
    err = float(jnp.max(jnp.abs(out - ref)))
    assert jnp.allclose(out, ref, rtol=1e-4, atol=1e-4), err

    # Batch-folded path (one grid step; recommended on single-TC v5e/v6e).
    out2 = jax.block_until_ready(tdatt_pallas(x, tparams, batch_block=B))
    err2 = float(jnp.max(jnp.abs(out2 - ref)))
    assert jnp.allclose(out2, ref, rtol=1e-4, atol=1e-4), err2

    print("KERNEL_OK")
</pallas_src>

<mosaic_0001>
module attributes {stable_mosaic.version = 11 : i64} {
  func.func @kernel(%arg0: i32, %arg1: memref<1x16x128xf32, #tpu.memory_space<vmem>>, %arg2: memref<96x128xf32, #tpu.memory_space<vmem>>, %arg3: memref<8x128xf32, #tpu.memory_space<vmem>>, %arg4: memref<128x128xf32, #tpu.memory_space<vmem>>, %arg5: memref<1x16x128xf32, #tpu.memory_space<vmem>>, %arg6: memref<128x128xf32, #tpu.memory_space<vmem>>) attributes {dimension_semantics = [#tpu.dimension_semantics<parallel>], iteration_bounds = array<i64: 2>, scalar_prefetch = 0 : i64, scratch_operands = 1 : i64, tpu.core_type = #tpu.core_type<tc>, window_params = [{transform_indices = @transform_0, window_bounds = array<i64: 1, 16, 128>}, {pipeline_mode = #tpu.pipeline_mode<synchronous>, transform_indices = @transform_1, window_bounds = array<i64: 96, 128>}, {pipeline_mode = #tpu.pipeline_mode<synchronous>, transform_indices = @transform_2, window_bounds = array<i64: 8, 128>}, {pipeline_mode = #tpu.pipeline_mode<synchronous>, transform_indices = @transform_3, window_bounds = array<i64: 128, 128>}, {transform_indices = @transform_4, window_bounds = array<i64: 1, 16, 128>}]} {
    %cst = arith.constant 0.000000e+00 : f32
    %0 = vector.broadcast %cst : f32 to vector<8x128xf32>
    %c0 = arith.constant 0 : index
    %c0_0 = arith.constant 0 : index
    %1 = vector.load %arg6[%c0, %c0_0] : memref<128x128xf32, #tpu.memory_space<vmem>>, vector<8x128xf32>
    tpu.vector_store %arg6[%c0, %c0_0], %0 {strides = array<i32>} : memref<128x128xf32, #tpu.memory_space<vmem>>, vector<8x128xf32>,
    %c24 = arith.constant 24 : index
    %c0_1 = arith.constant 0 : index
    %2 = vector.load %arg6[%c24, %c0_1] : memref<128x128xf32, #tpu.memory_space<vmem>>, vector<8x128xf32>
    tpu.vector_store %arg6[%c24, %c0_1], %0 {strides = array<i32>} : memref<128x128xf32, #tpu.memory_space<vmem>>, vector<8x128xf32>,
    %c32 = arith.constant 32 : index
    %c0_2 = arith.constant 0 : index
    %3 = vector.load %arg6[%c32, %c0_2] : memref<128x128xf32, #tpu.memory_space<vmem>>, vector<8x128xf32>
    tpu.vector_store %arg6[%c32, %c0_2], %0 {strides = array<i32>} : memref<128x128xf32, #tpu.memory_space<vmem>>, vector<8x128xf32>,
    %c56 = arith.constant 56 : index
    %c0_3 = arith.constant 0 : index
    %4 = vector.load %arg6[%c56, %c0_3] : memref<128x128xf32, #tpu.memory_space<vmem>>, vector<8x128xf32>
    tpu.vector_store %arg6[%c56, %c0_3], %0 {strides = array<i32>} : memref<128x128xf32, #tpu.memory_space<vmem>>, vector<8x128xf32>,
    %c64 = arith.constant 64 : index
    %c0_4 = arith.constant 0 : index
    %5 = vector.load %arg6[%c64, %c0_4] : memref<128x128xf32, #tpu.memory_space<vmem>>, vector<8x128xf32>
    tpu.vector_store %arg6[%c64, %c0_4], %0 {strides = array<i32>} : memref<128x128xf32, #tpu.memory_space<vmem>>, vector<8x128xf32>,
    %c88 = arith.constant 88 : index
    %c0_5 = arith.constant 0 : index
    %6 = vector.load %arg6[%c88, %c0_5] : memref<128x128xf32, #tpu.memory_space<vmem>>, vector<8x128xf32>
    tpu.vector_store %arg6[%c88, %c0_5], %0 {strides = array<i32>} : memref<128x128xf32, #tpu.memory_space<vmem>>, vector<8x128xf32>,
    %c96 = arith.constant 96 : index
    %c0_6 = arith.constant 0 : index
    %7 = vector.load %arg6[%c96, %c0_6] : memref<128x128xf32, #tpu.memory_space<vmem>>, vector<8x128xf32>
    tpu.vector_store %arg6[%c96, %c0_6], %0 {strides = array<i32>} : memref<128x128xf32, #tpu.memory_space<vmem>>, vector<8x128xf32>,
    %c120 = arith.constant 120 : index
    %c0_7 = arith.constant 0 : index
    %8 = vector.load %arg6[%c120, %c0_7] : memref<128x128xf32, #tpu.memory_space<vmem>>, vector<8x128xf32>
    tpu.vector_store %arg6[%c120, %c0_7], %0 {strides = array<i32>} : memref<128x128xf32, #tpu.memory_space<vmem>>, vector<8x128xf32>,
    %c0_8 = arith.constant 0 : index
    %c0_9 = arith.constant 0 : index
    %c0_10 = arith.constant 0 : index
    %9 = vector.load %arg1[%c0_8, %c0_9, %c0_10] : memref<1x16x128xf32, #tpu.memory_space<vmem>>, vector<1x16x128xf32>
    %10 = vector.shape_cast %9 : vector<1x16x128xf32> to vector<16x128xf32>
    %c8 = arith.constant 8 : index
    %c0_11 = arith.constant 0 : index
    %11 = vector.load %arg6[%c8, %c0_11] : memref<128x128xf32, #tpu.memory_space<vmem>>, vector<16x128xf32>
    tpu.vector_store %arg6[%c8, %c0_11], %10 {strides = array<i32>} : memref<128x128xf32, #tpu.memory_space<vmem>>, vector<16x128xf32>,
    %c0_12 = arith.constant 0 : index
    %c0_13 = arith.constant 0 : index
    %12 = vector.load %arg3[%c0_12, %c0_13] : memref<8x128xf32, #tpu.memory_space<vmem>>, vector<1x128xf32>
    %13 = vector.shape_cast %12 : vector<1x128xf32> to vector<128xf32>
    %14 = vector.shape_cast %13 : vector<128xf32> to vector<1x128xf32>
    %15 = vector.broadcast %14 : vector<1x128xf32> to vector<16x128xf32>
    %cst_14 = arith.constant 0.000000e+00 : f32
    %16 = vector.broadcast %cst_14 : f32 to vector<16x128xf32>
    %c6 = arith.constant 6 : index
    %c0_15 = arith.constant 0 : index
    %17 = vector.load %arg6[%c6, %c0_15] : memref<128x128xf32, #tpu.memory_space<vmem>>, vector<16x128xf32>
    %c16_i32 = arith.constant 16 : i32
    %18 = tpu.dynamic_rotate %17 by %c16_i32 dim 1 : vector<16x128xf32>, i32 -> vector<16x128xf32>
    %c0_16 = arith.constant 0 : index
    %c0_17 = arith.constant 0 : index
    %19 = vector.load %arg2[%c0_16, %c0_17] : memref<96x128xf32, #tpu.memory_space<vmem>>, vector<1x128xf32>
    %20 = vector.shape_cast %19 : vector<1x128xf32> to vector<128xf32>
    %21 = vector.shape_cast %20 : vector<128xf32> to vector<1x128xf32>
    %22 = vector.broadcast %21 : vector<1x128xf32> to vector<16x128xf32>
    %23 = arith.mulf %18, %22 : vector<16x128xf32>
    %24 = arith.addf %15, %23 : vector<16x128xf32>
    %c8_i32 = arith.constant 8 : i32
    %25 = tpu.dynamic_rotate %17 by %c8_i32 dim 1 : vector<16x128xf32>, i32 -> vector<16x128xf32>
    %c1 = arith.constant 1 : index
    %c0_18 = arith.constant 0 : index
    %26 = vector.load %arg2[%c1, %c0_18] : memref<96x128xf32, #tpu.memory_space<vmem>>, vector<1x128xf32>
    %27 = vector.shape_cast %26 : vector<1x128xf32> to vector<128xf32>
    %28 = vector.shape_cast %27 : vector<128xf32> to vector<1x128xf32>
    %29 = vector.broadcast %28 : vector<1x128xf32> to vector<16x128xf32>
    %30 = arith.mulf %25, %29 : vector<16x128xf32>
    %31 = arith.addf %16, %30 : vector<16x128xf32>
    %c2 = arith.constant 2 : index
    %c0_19 = arith.constant 0 : index
    %32 = vector.load %arg2[%c2, %c0_19] : memref<96x128xf32, #tpu.memory_space<vmem>>, vector<1x128xf32>
    %33 = vector.shape_cast %32 : vector<1x128xf32> to vector<128xf32>
    %34 = vector.shape_cast %33 : vector<128xf32> to vector<1x128xf32>
    %35 = vector.broadcast %34 : vector<1x128xf32> to vector<16x128xf32>
    %36 = arith.mulf %17, %35 : vector<16x128xf32>
    %37 = arith.addf %24, %36 : vector<16x128xf32>
    %c120_i32 = arith.constant 120 : i32
    %38 = tpu.dynamic_rotate %17 by %c120_i32 dim 1 : vector<16x128xf32>, i32 -> vector<16x128xf32>
    %c3 = arith.constant 3 : index
    %c0_20 = arith.constant 0 : index
    %39 = vector.load %arg2[%c3, %c0_20] : memref<96x128xf32, #tpu.memory_space<vmem>>, vector<1x128xf32>
    %40 = vector.shape_cast %39 : vector<1x128xf32> to vector<128xf32>
    %41 = vector.shape_cast %40 : vector<128xf32> to vector<1x128xf32>
    %42 = vector.broadcast %41 : vector<1x128xf32> to vector<16x128xf32>
    %43 = arith.mulf %38, %42 : vector<16x128xf32>
    %44 = arith.addf %31, %43 : vector<16x128xf32>
    %c112_i32 = arith.constant 112 : i32
    %45 = tpu.dynamic_rotate %17 by %c112_i32 dim 1 : vector<16x128xf32>, i32 -> vector<16x128xf32>
    %c4 = arith.constant 4 : index
    %c0_21 = arith.constant 0 : index
    %46 = vector.load %arg2[%c4, %c0_21] : memref<96x128xf32, #tpu.memory_space<vmem>>, vector<1x128xf32>
    %47 = vector.shape_cast %46 : vector<1x128xf32> to vector<128xf32>
    %48 = vector.shape_cast %47 : vector<128xf32> to vector<1x128xf32>
    %49 = vector.broadcast %48 : vector<1x128xf32> to vector<16x128xf32>
    %50 = arith.mulf %45, %49 : vector<16x128xf32>
    %51 = arith.addf %37, %50 : vector<16x128xf32>
    %c7 = arith.constant 7 : index
    %c0_22 = arith.constant 0 : index
    %52 = vector.load %arg6[%c7, %c0_22] : memref<128x128xf32, #tpu.memory_space<vmem>>, vector<16x128xf32>
    %c16_i32_23 = arith.constant 16 : i32
    %53 = tpu.dynamic_rotate %52 by %c16_i32_23 dim 1 : vector<16x128xf32>, i32 -> vector<16x128xf32>
    %c5 = arith.constant 5 : index
    %c0_24 = arith.constant 0 : index
    %54 = vector.load %arg2[%c5, %c0_24] : memref<96x128xf32, #tpu.memory_space<vmem>>, vector<1x128xf32>
    %55 = vector.shape_cast %54 : vector<1x128xf32> to vector<128xf32>
    %56 = vector.shape_cast %55 : vector<128xf32> to vector<1x128xf32>
    %57 = vector.broadcast %56 : vector<1x128xf32> to vector<16x128xf32>
    %58 = arith.mulf %53, %57 : vector<16x128xf32>
    %59 = arith.addf %44, %58 : vector<16x128xf32>
    %c8_i32_25 = arith.constant 8 : i32
    %60 = tpu.dynamic_rotate %52 by %c8_i32_25 dim 1 : vector<16x128xf32>, i32 -> vector<16x128xf32>
    %c6_26 = arith.constant 6 : index
    %c0_27 = arith.constant 0 : index
    %61 = vector.load %arg2[%c6_26, %c0_27] : memref<96x128xf32, #tpu.memory_space<vmem>>, vector<1x128xf32>
    %62 = vector.shape_cast %61 : vector<1x128xf32> to vector<128xf32>
    %63 = vector.shape_cast %62 : vector<128xf32> to vector<1x128xf32>
    %64 = vector.broadcast %63 : vector<1x128xf32> to vector<16x128xf32>
    %65 = arith.mulf %60, %64 : vector<16x128xf32>
    %66 = arith.addf %51, %65 : vector<16x128xf32>
    %c7_28 = arith.constant 7 : index
    %c0_29 = arith.constant 0 : index
    %67 = vector.load %arg2[%c7_28, %c0_29] : memref<96x128xf32, #tpu.memory_space<vmem>>, vector<1x128xf32>
    %68 = vector.shape_cast %67 : vector<1x128xf32> to vector<128xf32>
    %69 = vector.shape_cast %68 : vector<128xf32> to vector<1x128xf32>
    %70 = vector.broadcast %69 : vector<1x128xf32> to vector<16x128xf32>
    %71 = arith.mulf %52, %70 : vector<16x128xf32>
    %72 = arith.addf %59, %71 : vector<16x128xf32>
    %c120_i32_30 = arith.constant 120 : i32
    %73 = tpu.dynamic_rotate %52 by %c120_i32_30 dim 1 : vector<16x128xf32>, i32 -> vector<16x128xf32>
    %c8_31 = arith.constant 8 : index
    %c0_32 = arith.constant 0 : index
    %74 = vector.load %arg2[%c8_31, %c0_32] : memref<96x128xf32, #tpu.memory_space<vmem>>, vector<1x128xf32>
    %75 = vector.shape_cast %74 : vector<1x128xf32> to vector<128xf32>
    %76 = vector.shape_cast %75 : vector<128xf32> to vector<1x128xf32>
    %77 = vector.broadcast %76 : vector<1x128xf32> to vector<16x128xf32>
    %78 = arith.mulf %73, %77 : vector<16x128xf32>
    %79 = arith.addf %66, %78 : vector<16x128xf32>
    %c112_i32_33 = arith.constant 112 : i32
    %80 = tpu.dynamic_rotate %52 by %c112_i32_33 dim 1 : vector<16x128xf32>, i32 -> vector<16x128xf32>
    %c9 = arith.constant 9 : index
    %c0_34 = arith.constant 0 : index
    %81 = vector.load %arg2[%c9, %c0_34] : memref<96x128xf32, #tpu.memory_space<vmem>>, vector<1x128xf32>
    %82 = vector.shape_cast %81 : vector<1x128xf32> to vector<128xf32>
    %83 = vector.shape_cast %82 : vector<128xf32> to vector<1x128xf32>
    %84 = vector.broadcast %83 : vector<1x128xf32> to vector<16x128xf32>
    %85 = arith.mulf %80, %84 : vector<16x128xf32>
    %86 = arith.addf %72, %85 : vector<16x128xf32>
    %c8_35 = arith.constant 8 : index
    %c0_36 = arith.constant 0 : index
    %87 = vector.load %arg6[%c8_35, %c0_36] : memref<128x128xf32, #tpu.memory_space<vmem>>, vector<16x128xf32>
    %c16_i32_37 = arith.constant 16 : i32
    %88 = tpu.dynamic_rotate %87 by %c16_i32_37 dim 1 : vector<16x128xf32>, i32 -> vector<16x128xf32>
    %c10 = arith.constant 10 : index
    %c0_38 = arith.constant 0 : index
    %89 = vector.load %arg2[%c10, %c0_38] : memref<96x128xf32, #tpu.memory_space<vmem>>, vector<1x128xf32>
    %90 = vector.shape_cast %89 : vector<1x128xf32> to vector<128xf32>
    %91 = vector.shape_cast %90 : vector<128xf32> to vector<1x128xf32>
    %92 = vector.broadcast %91 : vector<1x128xf32> to vector<16x128xf32>
    %93 = arith.mulf %88, %92 : vector<16x128xf32>
    %94 = arith.addf %79, %93 : vector<16x128xf32>
    %c8_i32_39 = arith.constant 8 : i32
    %95 = tpu.dynamic_rotate %87 by %c8_i32_39 dim 1 : vector<16x128xf32>, i32 -> vector<16x128xf32>
    %c11 = arith.constant 11 : index
    %c0_40 = arith.constant 0 : index
    %96 = vector.load %arg2[%c11, %c0_40] : memref<96x128xf32, #tpu.memory_space<vmem>>, vector<1x128xf32>
    %97 = vector.shape_cast %96 : vector<1x128xf32> to vector<128xf32>
    %98 = vector.shape_cast %97 : vector<128xf32> to vector<1x128xf32>
    %99 = vector.broadcast %98 : vector<1x128xf32> to vector<16x128xf32>
    %100 = arith.mulf %95, %99 : vector<16x128xf32>
    %101 = arith.addf %86, %100 : vector<16x128xf32>
    %c12 = arith.constant 12 : index
    %c0_41 = arith.constant 0 : index
    %102 = vector.load %arg2[%c12, %c0_41] : memref<96x128xf32, #tpu.memory_space<vmem>>, vector<1x128xf32>
    %103 = vector.shape_cast %102 : vector<1x128xf32> to vector<128xf32>
    %104 = vector.shape_cast %103 : vector<128xf32> to vector<1x128xf32>
    %105 = vector.broadcast %104 : vector<1x128xf32> to vector<16x128xf32>
    %106 = arith.mulf %87, %105 : vector<16x128xf32>
    %107 = arith.addf %94, %106 : vector<16x128xf32>
    %c120_i32_42 = arith.constant 120 : i32
    %108 = tpu.dynamic_rotate %87 by %c120_i32_42 dim 1 : vector<16x128xf32>, i32 -> vector<16x128xf32>
    %c13 = arith.constant 13 : index
    %c0_43 = arith.constant 0 : index
    %109 = vector.load %arg2[%c13, %c0_43] : memref<96x128xf32, #tpu.memory_space<vmem>>, vector<1x128xf32>
    %110 = vector.shape_cast %109 : vector<1x128xf32> to vector<128xf32>
    %111 = vector.shape_cast %110 : vector<128xf32> to vector<1x128xf32>
    %112 = vector.broadcast %111 : vector<1x128xf32> to vector<16x128xf32>
    %113 = arith.mulf %108, %112 : vector<16x128xf32>
    %114 = arith.addf %101, %113 : vector<16x128xf32>
    %c112_i32_44 = arith.constant 112 : i32
    %115 = tpu.dynamic_rotate %87 by %c112_i32_44 dim 1 : vector<16x128xf32>, i32 -> vector<16x128xf32>
    %c14 = arith.constant 14 : index
    %c0_45 = arith.constant 0 : index
    %116 = vector.load %arg2[%c14, %c0_45] : memref<96x128xf32, #tpu.memory_space<vmem>>, vector<1x128xf32>
    %117 = vector.shape_cast %116 : vector<1x128xf32> to vector<128xf32>
    %118 = vector.shape_cast %117 : vector<128xf32> to vector<1x128xf32>
    %119 = vector.broadcast %118 : vector<1x128xf32> to vector<16x128xf32>
    %120 = arith.mulf %115, %119 : vector<16x128xf32>
    %121 = arith.addf %107, %120 : vector<16x128xf32>
    %c9_46 = arith.constant 9 : index
    %c0_47 = arith.constant 0 : index
    %122 = vector.load %arg6[%c9_46, %c0_47] : memref<128x128xf32, #tpu.memory_space<vmem>>, vector<16x128xf32>
    %c16_i32_48 = arith.constant 16 : i32
    %123 = tpu.dynamic_rotate %122 by %c16_i32_48 dim 1 : vector<16x128xf32>, i32 -> vector<16x128xf32>
    %c15 = arith.constant 15 : index
    %c0_49 = arith.constant 0 : index
    %124 = vector.load %arg2[%c15, %c0_49] : memref<96x128xf32, #tpu.memory_space<vmem>>, vector<1x128xf32>
    %125 = vector.shape_cast %124 : vector<1x128xf32> to vector<128xf32>
    %126 = vector.shape_cast %125 : vector<128xf32> to vector<1x128xf32>
    %127 = vector.broadcast %126 : vector<1x128xf32> to vector<16x128xf32>
    %128 = arith.mulf %123, %127 : vector<16x128xf32>
    %129 = arith.addf %114, %128 : vector<16x128xf32>
    %c8_i32_50 = arith.constant 8 : i32
    %130 = tpu.dynamic_rotate %122 by %c8_i32_50 dim 1 : vector<16x128xf32>, i32 -> vector<16x128xf32>
    %c16 = arith.constant 16 : index
    %c0_51 = arith.constant 0 : index
    %131 = vector.load %arg2[%c16, %c0_51] : memref<96x128xf32, #tpu.memory_space<vmem>>, vector<1x128xf32>
    %132 = vector.shape_cast %131 : vector<1x128xf32> to vector<128xf32>
    %133 = vector.shape_cast %132 : vector<128xf32> to vector<1x128xf32>
    %134 = vector.broadcast %133 : vector<1x128xf32> to vector<16x128xf32>
    %135 = arith.mulf %130, %134 : vector<16x128xf32>
    %136 = arith.addf %121, %135 : vector<16x128xf32>
    %c17 = arith.constant 17 : index
    %c0_52 = arith.constant 0 : index
    %137 = vector.load %arg2[%c17, %c0_52] : memref<96x128xf32, #tpu.memory_space<vmem>>, vector<1x128xf32>
    %138 = vector.shape_cast %137 : vector<1x128xf32> to vector<128xf32>
    %139 = vector.shape_cast %138 : vector<128xf32> to vector<1x128xf32>
    %140 = vector.broadcast %139 : vector<1x128xf32> to vector<16x128xf32>
    %141 = arith.mulf %122, %140 : vector<16x128xf32>
    %142 = arith.addf %129, %141 : vector<16x128xf32>
    %c120_i32_53 = arith.constant 120 : i32
    %143 = tpu.dynamic_rotate %122 by %c120_i32_53 dim 1 : vector<16x128xf32>, i32 -> vector<16x128xf32>
    %c18 = arith.constant 18 : index
    %c0_54 = arith.constant 0 : index
    %144 = vector.load %arg2[%c18, %c0_54] : memref<96x128xf32, #tpu.memory_space<vmem>>, vector<1x128xf32>
    %145 = vector.shape_cast %144 : vector<1x128xf32> to vector<128xf32>
    %146 = vector.shape_cast %145 : vector<128xf32> to vector<1x128xf32>
    %147 = vector.broadcast %146 : vector<1x128xf32> to vector<16x128xf32>
    %148 = arith.mulf %143, %147 : vector<16x128xf32>
    %149 = arith.addf %136, %148 : vector<16x128xf32>
    %c112_i32_55 = arith.constant 112 : i32
    %150 = tpu.dynamic_rotate %122 by %c112_i32_55 dim 1 : vector<16x128xf32>, i32 -> vector<16x128xf32>
    %c19 = arith.constant 19 : index
    %c0_56 = arith.constant 0 : index
    %151 = vector.load %arg2[%c19, %c0_56] : memref<96x128xf32, #tpu.memory_space<vmem>>, vector<1x128xf32>
    %152 = vector.shape_cast %151 : vector<1x128xf32> to vector<128xf32>
    %153 = vector.shape_cast %152 : vector<128xf32> to vector<1x128xf32>
    %154 = vector.broadcast %153 : vector<1x128xf32> to vector<16x128xf32>
    %155 = arith.mulf %150, %154 : vector<16x128xf32>
    %156 = arith.addf %142, %155 : vector<16x128xf32>
    %c10_57 = arith.constant 10 : index
    %c0_58 = arith.constant 0 : index
    %157 = vector.load %arg6[%c10_57, %c0_58] : memref<128x128xf32, #tpu.memory_space<vmem>>, vector<16x128xf32>
    %c16_i32_59 = arith.constant 16 : i32
    %158 = tpu.dynamic_rotate %157 by %c16_i32_59 dim 1 : vector<16x128xf32>, i32 -> vector<16x128xf32>
    %c20 = arith.constant 20 : index
    %c0_60 = arith.constant 0 : index
    %159 = vector.load %arg2[%c20, %c0_60] : memref<96x128xf32, #tpu.memory_space<vmem>>, vector<1x128xf32>
    %160 = vector.shape_cast %159 : vector<1x128xf32> to vector<128xf32>
    %161 = vector.shape_cast %160 : vector<128xf32> to vector<1x128xf32>
    %162 = vector.broadcast %161 : vector<1x128xf32> to vector<16x128xf32>
    %163 = arith.mulf %158, %162 : vector<16x128xf32>
    %164 = arith.addf %149, %163 : vector<16x128xf32>
    %c8_i32_61 = arith.constant 8 : i32
    %165 = tpu.dynamic_rotate %157 by %c8_i32_61 dim 1 : vector<16x128xf32>, i32 -> vector<16x128xf32>
    %c21 = arith.constant 21 : index
    %c0_62 = arith.constant 0 : index
    %166 = vector.load %arg2[%c21, %c0_62] : memref<96x128xf32, #tpu.memory_space<vmem>>, vector<1x128xf32>
    %167 = vector.shape_cast %166 : vector<1x128xf32> to vector<128xf32>
    %168 = vector.shape_cast %167 : vector<128xf32> to vector<1x128xf32>
    %169 = vector.broadcast %168 : vector<1x128xf32> to vector<16x128xf32>
    %170 = arith.mulf %165, %169 : vector<16x128xf32>
    %171 = arith.addf %156, %170 : vector<16x128xf32>
    %c22 = arith.constant 22 : index
    %c0_63 = arith.constant 0 : index
    %172 = vector.load %arg2[%c22, %c0_63] : memref<96x128xf32, #tpu.memory_space<vmem>>, vector<1x128xf32>
    %173 = vector.shape_cast %172 : vector<1x128xf32> to vector<128xf32>
    %174 = vector.shape_cast %173 : vector<128xf32> to vector<1x128xf32>
    %175 = vector.broadcast %174 : vector<1x128xf32> to vector<16x128xf32>
    %176 = arith.mulf %157, %175 : vector<16x128xf32>
    %177 = arith.addf %164, %176 : vector<16x128xf32>
    %c120_i32_64 = arith.constant 120 : i32
    %178 = tpu.dynamic_rotate %157 by %c120_i32_64 dim 1 : vector<16x128xf32>, i32 -> vector<16x128xf32>
    %c23 = arith.constant 23 : index
    %c0_65 = arith.constant 0 : index
    %179 = vector.load %arg2[%c23, %c0_65] : memref<96x128xf32, #tpu.memory_space<vmem>>, vector<1x128xf32>
    %180 = vector.shape_cast %179 : vector<1x128xf32> to vector<128xf32>
    %181 = vector.shape_cast %180 : vector<128xf32> to vector<1x128xf32>
    %182 = vector.broadcast %181 : vector<1x128xf32> to vector<16x128xf32>
    %183 = arith.mulf %178, %182 : vector<16x128xf32>
    %184 = arith.addf %171, %183 : vector<16x128xf32>
    %c112_i32_66 = arith.constant 112 : i32
    %185 = tpu.dynamic_rotate %157 by %c112_i32_66 dim 1 : vector<16x128xf32>, i32 -> vector<16x128xf32>
    %c24_67 = arith.constant 24 : index
    %c0_68 = arith.constant 0 : index
    %186 = vector.load %arg2[%c24_67, %c0_68] : memref<96x128xf32, #tpu.memory_space<vmem>>, vector<1x128xf32>
    %187 = vector.shape_cast %186 : vector<1x128xf32> to vector<128xf32>
    %188 = vector.shape_cast %187 : vector<128xf32> to vector<1x128xf32>
    %189 = vector.broadcast %188 : vector<1x128xf32> to vector<16x128xf32>
    %190 = arith.mulf %185, %189 : vector<16x128xf32>
    %191 = arith.addf %177, %190 : vector<16x128xf32>
    %192 = arith.addf %191, %184 : vector<16x128xf32>
    %c1_69 = arith.constant 1 : index
    %c0_70 = arith.constant 0 : index
    %193 = vector.load %arg3[%c1_69, %c0_70] : memref<8x128xf32, #tpu.memory_space<vmem>>, vector<1x128xf32>
    %194 = vector.shape_cast %193 : vector<1x128xf32> to vector<128xf32>
    %195 = vector.shape_cast %194 : vector<128xf32> to vector<1x128xf32>
    %196 = vector.broadcast %195 : vector<1x128xf32> to vector<16x128xf32>
    %c2_71 = arith.constant 2 : index
    %c0_72 = arith.constant 0 : index
    %197 = vector.load %arg3[%c2_71, %c0_72] : memref<8x128xf32, #tpu.memory_space<vmem>>, vector<1x128xf32>
    %198 = vector.shape_cast %197 : vector<1x128xf32> to vector<128xf32>
    %199 = vector.shape_cast %198 : vector<128xf32> to vector<1x128xf32>
    %200 = vector.broadcast %199 : vector<1x128xf32> to vector<16x128xf32>
    %c3_73 = arith.constant 3 : index
    %c0_74 = arith.constant 0 : index
    %201 = vector.load %arg3[%c3_73, %c0_74] : memref<8x128xf32, #tpu.memory_space<vmem>>, vector<1x128xf32>
    %202 = vector.shape_cast %201 : vector<1x128xf32> to vector<128xf32>
    %203 = vector.shape_cast %202 : vector<128xf32> to vector<1x128xf32>
    %204 = vector.broadcast %203 : vector<1x128xf32> to vector<16x128xf32>
    %c56_i32 = arith.constant 56 : i32
    %205 = tpu.dynamic_rotate %192 by %c56_i32 dim 1 : vector<16x128xf32>, i32 -> vector<16x128xf32>
    %c43 = arith.constant 43 : index
    %c0_75 = arith.constant 0 : index
    %206 = vector.load %arg2[%c43, %c0_75] : memref<96x128xf32, #tpu.memory_space<vmem>>, vector<1x128xf32>
    %207 = vector.shape_cast %206 : vector<1x128xf32> to vector<128xf32>
    %208 = vector.shape_cast %207 : vector<128xf32> to vector<1x128xf32>
    %209 = vector.broadcast %208 : vector<1x128xf32> to vector<16x128xf32>
    %210 = arith.mulf %205, %209 : vector<16x128xf32>
    %211 = arith.addf %204, %210 : vector<16x128xf32>
    %c48_i32 = arith.constant 48 : i32
    %212 = tpu.dynamic_rotate %192 by %c48_i32 dim 1 : vector<16x128xf32>, i32 -> vector<16x128xf32>
    %c44 = arith.constant 44 : index
    %c0_76 = arith.constant 0 : index
    %213 = vector.load %arg2[%c44, %c0_76] : memref<96x128xf32, #tpu.memory_space<vmem>>, vector<1x128xf32>
    %214 = vector.shape_cast %213 : vector<1x128xf32> to vector<128xf32>
    %215 = vector.shape_cast %214 : vector<128xf32> to vector<1x128xf32>
    %216 = vector.broadcast %215 : vector<1x128xf32> to vector<16x128xf32>
    %217 = arith.mulf %212, %216 : vector<16x128xf32>
    %218 = arith.addf %211, %217 : vector<16x128xf32>
    %c40_i32 = arith.constant 40 : i32
    %219 = tpu.dynamic_rotate %192 by %c40_i32 dim 1 : vector<16x128xf32>, i32 -> vector<16x128xf32>
    %c32_77 = arith.constant 32 : index
    %c0_78 = arith.constant 0 : index
    %220 = vector.load %arg2[%c32_77, %c0_78] : memref<96x128xf32, #tpu.memory_space<vmem>>, vector<1x128xf32>
    %221 = vector.shape_cast %220 : vector<1x128xf32> to vector<128xf32>
    %222 = vector.shape_cast %221 : vector<128xf32> to vector<1x128xf32>
    %223 = vector.broadcast %222 : vector<1x128xf32> to vector<16x128xf32>
    %224 = arith.mulf %219, %223 : vector<16x128xf32>
    %225 = arith.addf %200, %224 : vector<16x128xf32>
    %c45 = arith.constant 45 : index
    %c0_79 = arith.constant 0 : index
    %226 = vector.load %arg2[%c45, %c0_79] : memref<96x128xf32, #tpu.memory_space<vmem>>, vector<1x128xf32>
    %227 = vector.shape_cast %226 : vector<1x128xf32> to vector<128xf32>
    %228 = vector.shape_cast %227 : vector<128xf32> to vector<1x128xf32>
    %229 = vector.broadcast %228 : vector<1x128xf32> to vector<16x128xf32>
    %230 = arith.mulf %219, %229 : vector<16x128xf32>
    %231 = arith.addf %218, %230 : vector<16x128xf32>
    %c32_i32 = arith.constant 32 : i32
    %232 = tpu.dynamic_rotate %192 by %c32_i32 dim 1 : vector<16x128xf32>, i32 -> vector<16x128xf32>
    %c33 = arith.constant 33 : index
    %c0_80 = arith.constant 0 : index
    %233 = vector.load %arg2[%c33, %c0_80] : memref<96x128xf32, #tpu.memory_space<vmem>>, vector<1x128xf32>
    %234 = vector.shape_cast %233 : vector<1x128xf32> to vector<128xf32>
    %235 = vector.shape_cast %234 : vector<128xf32> to vector<1x128xf32>
    %236 = vector.broadcast %235 : vector<1x128xf32> to vector<16x128xf32>
    %237 = arith.mulf %232, %236 : vector<16x128xf32>
    %238 = arith.addf %225, %237 : vector<16x128xf32>
    %c46 = arith.constant 46 : index
    %c0_81 = arith.constant 0 : index
    %239 = vector.load %arg2[%c46, %c0_81] : memref<96x128xf32, #tpu.memory_space<vmem>>, vector<1x128xf32>
    %240 = vector.shape_cast %239 : vector<1x128xf32> to vector<128xf32>
    %241 = vector.shape_cast %240 : vector<128xf32> to vector<1x128xf32>
    %242 = vector.broadcast %241 : vector<1x128xf32> to vector<16x128xf32>
    %243 = arith.mulf %232, %242 : vector<16x128xf32>
    %244 = arith.addf %231, %243 : vector<16x128xf32>
    %c24_i32 = arith.constant 24 : i32
    %245 = tpu.dynamic_rotate %192 by %c24_i32 dim 1 : vector<16x128xf32>, i32 -> vector<16x128xf32>
    %c25 = arith.constant 25 : index
    %c0_82 = arith.constant 0 : index
    %246 = vector.load %arg2[%c25, %c0_82] : memref<96x128xf32, #tpu.memory_space<vmem>>, vector<1x128xf32>
    %247 = vector.shape_cast %246 : vector<1x128xf32> to vector<128xf32>
    %248 = vector.shape_cast %247 : vector<128xf32> to vector<1x128xf32>
    %249 = vector.broadcast %248 : vector<1x128xf32> to vector<16x128xf32>
    %250 = arith.mulf %245, %249 : vector<16x128xf32>
    %251 = arith.addf %196, %250 : vector<16x128xf32>
    %c34 = arith.constant 34 : index
    %c0_83 = arith.constant 0 : index
    %252 = vector.load %arg2[%c34, %c0_83] : memref<96x128xf32, #tpu.memory_space<vmem>>, vector<1x128xf32>
    %253 = vector.shape_cast %252 : vector<1x128xf32> to vector<128xf32>
    %254 = vector.shape_cast %253 : vector<128xf32> to vector<1x128xf32>
    %255 = vector.broadcast %254 : vector<1x128xf32> to vector<16x128xf32>
    %256 = arith.mulf %245, %255 : vector<16x128xf32>
    %257 = arith.addf %238, %256 : vector<16x128xf32>
    %c47 = arith.constant 47 : index
    %c0_84 = arith.constant 0 : index
    %258 = vector.load %arg2[%c47, %c0_84] : memref<96x128xf32, #tpu.memory_space<vmem>>, vector<1x128xf32>
    %259 = vector.shape_cast %258 : vector<1x128xf32> to vector<128xf32>
    %260 = vector.shape_cast %259 : vector<128xf32> to vector<1x128xf32>
    %261 = vector.broadcast %260 : vector<1x128xf32> to vector<16x128xf32>
    %262 = arith.mulf %245, %261 : vector<16x128xf32>
    %263 = arith.addf %244, %262 : vector<16x128xf32>
    %c16_i32_85 = arith.constant 16 : i32
    %264 = tpu.dynamic_rotate %192 by %c16_i32_85 dim 1 : vector<16x128xf32>, i32 -> vector<16x128xf32>
    %c26 = arith.constant 26 : index
    %c0_86 = arith.constant 0 : index
    %265 = vector.load %arg2[%c26, %c0_86] : memref<96x128xf32, #tpu.memory_space<vmem>>, vector<1x128xf32>
    %266 = vector.shape_cast %265 : vector<1x128xf32> to vector<128xf32>
    %267 = vector.shape_cast %266 : vector<128xf32> to vector<1x128xf32>
    %268 = vector.broadcast %267 : vector<1x128xf32> to vector<16x128xf32>
    %269 = arith.mulf %264, %268 : vector<16x128xf32>
    %270 = arith.addf %251, %269 : vector<16x128xf32>
    %c35 = arith.constant 35 : index
    %c0_87 = arith.constant 0 : index
    %271 = vector.load %arg2[%c35, %c0_87] : memref<96x128xf32, #tpu.memory_space<vmem>>, vector<1x128xf32>
    %272 = vector.shape_cast %271 : vector<1x128xf32> to vector<128xf32>
    %273 = vector.shape_cast %272 : vector<128xf32> to vector<1x128xf32>
    %274 = vector.broadcast %273 : vector<1x128xf32> to vector<16x128xf32>
    %275 = arith.mulf %264, %274 : vector<16x128xf32>
    %276 = arith.addf %257, %275 : vector<16x128xf32>
    %c48 = arith.constant 48 : index
    %c0_88 = arith.constant 0 : index
    %277 = vector.load %arg2[%c48, %c0_88] : memref<96x128xf32, #tpu.memory_space<vmem>>, vector<1x128xf32>
    %278 = vector.shape_cast %277 : vector<1x128xf32> to vector<128xf32>
    %279 = vector.shape_cast %278 : vector<128xf32> to vector<1x128xf32>
    %280 = vector.broadcast %279 : vector<1x128xf32> to vector<16x128xf32>
    %281 = arith.mulf %264, %280 : vector<16x128xf32>
    %282 = arith.addf %263, %281 : vector<16x128xf32>
    %c8_i32_89 = arith.constant 8 : i32
    %283 = tpu.dynamic_rotate %192 by %c8_i32_89 dim 1 : vector<16x128xf32>, i32 -> vector<16x128xf32>
    %c27 = arith.constant 27 : index
    %c0_90 = arith.constant 0 : index
    %284 = vector.load %arg2[%c27, %c0_90] : memref<96x128xf32, #tpu.memory_space<vmem>>, vector<1x128xf32>
    %285 = vector.shape_cast %284 : vector<1x128xf32> to vector<128xf32>
    %286 = vector.shape_cast %285 : vector<128xf32> to vector<1x128xf32>
    %287 = vector.broadcast %286 : vector<1x128xf32> to vector<16x128xf32>
    %288 = arith.mulf %283, %287 : vector<16x128xf32>
    %289 = arith.addf %270, %288 : vector<16x128xf32>
    %c36 = arith.constant 36 : index
    %c0_91 = arith.constant 0 : index
    %290 = vector.load %arg2[%c36, %c0_91] : memref<96x128xf32, #tpu.memory_space<vmem>>, vector<1x128xf32>
    %291 = vector.shape_cast %290 : vector<1x128xf32> to vector<128xf32>
    %292 = vector.shape_cast %291 : vector<128xf32> to vector<1x128xf32>
    %293 = vector.broadcast %292 : vector<1x128xf32> to vector<16x128xf32>
    %294 = arith.mulf %283, %293 : vector<16x128xf32>
    %295 = arith.addf %276, %294 : vector<16x128xf32>
    %c49 = arith.constant 49 : index
    %c0_92 = arith.constant 0 : index
    %296 = vector.load %arg2[%c49, %c0_92] : memref<96x128xf32, #tpu.memory_space<vmem>>, vector<1x128xf32>
    %297 = vector.shape_cast %296 : vector<1x128xf32> to vector<128xf32>
    %298 = vector.shape_cast %297 : vector<128xf32> to vector<1x128xf32>
    %299 = vector.broadcast %298 : vector<1x128xf32> to vector<16x128xf32>
    %300 = arith.mulf %283, %299 : vector<16x128xf32>
    %301 = arith.addf %282, %300 : vector<16x128xf32>
    %c28 = arith.constant 28 : index
    %c0_93 = arith.constant 0 : index
    %302 = vector.load %arg2[%c28, %c0_93] : memref<96x128xf32, #tpu.memory_space<vmem>>, vector<1x128xf32>
    %303 = vector.shape_cast %302 : vector<1x128xf32> to vector<128xf32>
    %304 = vector.shape_cast %303 : vector<128xf32> to vector<1x128xf32>
    %305 = vector.broadcast %304 : vector<1x128xf32> to vector<16x128xf32>
    %306 = arith.mulf %192, %305 : vector<16x128xf32>
    %307 = arith.addf %289, %306 : vector<16x128xf32>
    %c37 = arith.constant 37 : index
    %c0_94 = arith.constant 0 : index
    %308 = vector.load %arg2[%c37, %c0_94] : memref<96x128xf32, #tpu.memory_space<vmem>>, vector<1x128xf32>
    %309 = vector.shape_cast %308 : vector<1x128xf32> to vector<128xf32>
    %310 = vector.shape_cast %309 : vector<128xf32> to vector<1x128xf32>
    %311 = vector.broadcast %310 : vector<1x128xf32> to vector<16x128xf32>
    %312 = arith.mulf %192, %311 : vector<16x128xf32>
    %313 = arith.addf %295, %312 : vector<16x128xf32>
    %c50 = arith.constant 50 : index
    %c0_95 = arith.constant 0 : index
    %314 = vector.load %arg2[%c50, %c0_95] : memref<96x128xf32, #tpu.memory_space<vmem>>, vector<1x128xf32>
    %315 = vector.shape_cast %314 : vector<1x128xf32> to vector<128xf32>
    %316 = vector.shape_cast %315 : vector<128xf32> to vector<1x128xf32>
    %317 = vector.broadcast %316 : vector<1x128xf32> to vector<16x128xf32>
    %318 = arith.mulf %192, %317 : vector<16x128xf32>
    %319 = arith.addf %301, %318 : vector<16x128xf32>
    %c120_i32_96 = arith.constant 120 : i32
    %320 = tpu.dynamic_rotate %192 by %c120_i32_96 dim 1 : vector<16x128xf32>, i32 -> vector<16x128xf32>
    %c29 = arith.constant 29 : index
    %c0_97 = arith.constant 0 : index
    %321 = vector.load %arg2[%c29, %c0_97] : memref<96x128xf32, #tpu.memory_space<vmem>>, vector<1x128xf32>
    %322 = vector.shape_cast %321 : vector<1x128xf32> to vector<128xf32>
    %323 = vector.shape_cast %322 : vector<128xf32> to vector<1x128xf32>
    %324 = vector.broadcast %323 : vector<1x128xf32> to vector<16x128xf32>
    %325 = arith.mulf %320, %324 : vector<16x128xf32>
    %326 = arith.addf %307, %325 : vector<16x128xf32>
    %c38 = arith.constant 38 : index
    %c0_98 = arith.constant 0 : index
    %327 = vector.load %arg2[%c38, %c0_98] : memref<96x128xf32, #tpu.memory_space<vmem>>, vector<1x128xf32>
    %328 = vector.shape_cast %327 : vector<1x128xf32> to vector<128xf32>
    %329 = vector.shape_cast %328 : vector<128xf32> to vector<1x128xf32>
    %330 = vector.broadcast %329 : vector<1x128xf32> to vector<16x128xf32>
    %331 = arith.mulf %320, %330 : vector<16x128xf32>
    %332 = arith.addf %313, %331 : vector<16x128xf32>
    %c51 = arith.constant 51 : index
    %c0_99 = arith.constant 0 : index
    %333 = vector.load %arg2[%c51, %c0_99] : memref<96x128xf32, #tpu.memory_space<vmem>>, vector<1x128xf32>
    %334 = vector.shape_cast %333 : vector<1x128xf32> to vector<128xf32>
    %335 = vector.shape_cast %334 : vector<128xf32> to vector<1x128xf32>
    %336 = vector.broadcast %335 : vector<1x128xf32> to vector<16x128xf32>
    %337 = arith.mulf %320, %336 : vector<16x128xf32>
    %338 = arith.addf %319, %337 : vector<16x128xf32>
    %c112_i32_100 = arith.constant 112 : i32
    %339 = tpu.dynamic_rotate %192 by %c112_i32_100 dim 1 : vector<16x128xf32>, i32 -> vector<16x128xf32>
    %c30 = arith.constant 30 : index
    %c0_101 = arith.constant 0 : index
    %340 = vector.load %arg2[%c30, %c0_101] : memref<96x128xf32, #tpu.memory_space<vmem>>, vector<1x128xf32>
    %341 = vector.shape_cast %340 : vector<1x128xf32> to vector<128xf32>
    %342 = vector.shape_cast %341 : vector<128xf32> to vector<1x128xf32>
    %343 = vector.broadcast %342 : vector<1x128xf32> to vector<16x128xf32>
    %344 = arith.mulf %339, %343 : vector<16x128xf32>
    %345 = arith.addf %326, %344 : vector<16x128xf32>
    %c39 = arith.constant 39 : index
    %c0_102 = arith.constant 0 : index
    %346 = vector.load %arg2[%c39, %c0_102] : memref<96x128xf32, #tpu.memory_space<vmem>>, vector<1x128xf32>
    %347 = vector.shape_cast %346 : vector<1x128xf32> to vector<128xf32>
    %348 = vector.shape_cast %347 : vector<128xf32> to vector<1x128xf32>
    %349 = vector.broadcast %348 : vector<1x128xf32> to vector<16x128xf32>
    %350 = arith.mulf %339, %349 : vector<16x128xf32>
    %351 = arith.addf %332, %350 : vector<16x128xf32>
    %c52 = arith.constant 52 : index
    %c0_103 = arith.constant 0 : index
    %352 = vector.load %arg2[%c52, %c0_103] : memref<96x128xf32, #tpu.memory_space<vmem>>, vector<1x128xf32>
    %353 = vector.shape_cast %352 : vector<1x128xf32> to vector<128xf32>
    %354 = vector.shape_cast %353 : vector<128xf32> to vector<1x128xf32>
    %355 = vector.broadcast %354 : vector<1x128xf32> to vector<16x128xf32>
    %356 = arith.mulf %339, %355 : vector<16x128xf32>
    %357 = arith.addf %338, %356 : vector<16x128xf32>
    %c104_i32 = arith.constant 104 : i32
    %358 = tpu.dynamic_rotate %192 by %c104_i32 dim 1 : vector<16x128xf32>, i32 -> vector<16x128xf32>
    %c31 = arith.constant 31 : index
    %c0_104 = arith.constant 0 : index
    %359 = vector.load %arg2[%c31, %c0_104] : memref<96x128xf32, #tpu.memory_space<vmem>>, vector<1x128xf32>
    %360 = vector.shape_cast %359 : vector<1x128xf32> to vector<128xf32>
    %361 = vector.shape_cast %360 : vector<128xf32> to vector<1x128xf32>
    %362 = vector.broadcast %361 : vector<1x128xf32> to vector<16x128xf32>
    %363 = arith.mulf %358, %362 : vector<16x128xf32>
    %364 = arith.addf %345, %363 : vector<16x128xf32>
    %c40 = arith.constant 40 : index
    %c0_105 = arith.constant 0 : index
    %365 = vector.load %arg2[%c40, %c0_105] : memref<96x128xf32, #tpu.memory_space<vmem>>, vector<1x128xf32>
    %366 = vector.shape_cast %365 : vector<1x128xf32> to vector<128xf32>
    %367 = vector.shape_cast %366 : vector<128xf32> to vector<1x128xf32>
    %368 = vector.broadcast %367 : vector<1x128xf32> to vector<16x128xf32>
    %369 = arith.mulf %358, %368 : vector<16x128xf32>
    %370 = arith.addf %351, %369 : vector<16x128xf32>
    %c53 = arith.constant 53 : index
    %c0_106 = arith.constant 0 : index
    %371 = vector.load %arg2[%c53, %c0_106] : memref<96x128xf32, #tpu.memory_space<vmem>>, vector<1x128xf32>
    %372 = vector.shape_cast %371 : vector<1x128xf32> to vector<128xf32>
    %373 = vector.shape_cast %372 : vector<128xf32> to vector<1x128xf32>
    %374 = vector.broadcast %373 : vector<1x128xf32> to vector<16x128xf32>
    %375 = arith.mulf %358, %374 : vector<16x128xf32>
    %376 = arith.addf %357, %375 : vector<16x128xf32>
    %c96_i32 = arith.constant 96 : i32
    %377 = tpu.dynamic_rotate %192 by %c96_i32 dim 1 : vector<16x128xf32>, i32 -> vector<16x128xf32>
    %c41 = arith.constant 41 : index
    %c0_107 = arith.constant 0 : index
    %378 = vector.load %arg2[%c41, %c0_107] : memref<96x128xf32, #tpu.memory_space<vmem>>, vector<1x128xf32>
    %379 = vector.shape_cast %378 : vector<1x128xf32> to vector<128xf32>
    %380 = vector.shape_cast %379 : vector<128xf32> to vector<1x128xf32>
    %381 = vector.broadcast %380 : vector<1x128xf32> to vector<16x128xf32>
    %382 = arith.mulf %377, %381 : vector<16x128xf32>
    %383 = arith.addf %370, %382 : vector<16x128xf32>
    %c54 = arith.constant 54 : index
    %c0_108 = arith.constant 0 : index
    %384 = vector.load %arg2[%c54, %c0_108] : memref<96x128xf32, #tpu.memory_space<vmem>>, vector<1x128xf32>
    %385 = vector.shape_cast %384 : vector<1x128xf32> to vector<128xf32>
    %386 = vector.shape_cast %385 : vector<128xf32> to vector<1x128xf32>
    %387 = vector.broadcast %386 : vector<1x128xf32> to vector<16x128xf32>
    %388 = arith.mulf %377, %387 : vector<16x128xf32>
    %389 = arith.addf %376, %388 : vector<16x128xf32>
    %c88_i32 = arith.constant 88 : i32
    %390 = tpu.dynamic_rotate %192 by %c88_i32 dim 1 : vector<16x128xf32>, i32 -> vector<16x128xf32>
    %c42 = arith.constant 42 : index
    %c0_109 = arith.constant 0 : index
    %391 = vector.load %arg2[%c42, %c0_109] : memref<96x128xf32, #tpu.memory_space<vmem>>, vector<1x128xf32>
    %392 = vector.shape_cast %391 : vector<1x128xf32> to vector<128xf32>
    %393 = vector.shape_cast %392 : vector<128xf32> to vector<1x128xf32>
    %394 = vector.broadcast %393 : vector<1x128xf32> to vector<16x128xf32>
    %395 = arith.mulf %390, %394 : vector<16x128xf32>
    %396 = arith.addf %383, %395 : vector<16x128xf32>
    %c55 = arith.constant 55 : index
    %c0_110 = arith.constant 0 : index
    %397 = vector.load %arg2[%c55, %c0_110] : memref<96x128xf32, #tpu.memory_space<vmem>>, vector<1x128xf32>
    %398 = vector.shape_cast %397 : vector<1x128xf32> to vector<128xf32>
    %399 = vector.shape_cast %398 : vector<128xf32> to vector<1x128xf32>
    %400 = vector.broadcast %399 : vector<1x128xf32> to vector<16x128xf32>
    %401 = arith.mulf %390, %400 : vector<16x128xf32>
    %402 = arith.addf %389, %401 : vector<16x128xf32>
    %c80_i32 = arith.constant 80 : i32
    %403 = tpu.dynamic_rotate %192 by %c80_i32 dim 1 : vector<16x128xf32>, i32 -> vector<16x128xf32>
    %c56_111 = arith.constant 56 : index
    %c0_112 = arith.constant 0 : index
    %404 = vector.load %arg2[%c56_111, %c0_112] : memref<96x128xf32, #tpu.memory_space<vmem>>, vector<1x128xf32>
    %405 = vector.shape_cast %404 : vector<1x128xf32> to vector<128xf32>
    %406 = vector.shape_cast %405 : vector<128xf32> to vector<1x128xf32>
    %407 = vector.broadcast %406 : vector<1x128xf32> to vector<16x128xf32>
    %408 = arith.mulf %403, %407 : vector<16x128xf32>
    %409 = arith.addf %402, %408 : vector<16x128xf32>
    %c72_i32 = arith.constant 72 : i32
    %410 = tpu.dynamic_rotate %192 by %c72_i32 dim 1 : vector<16x128xf32>, i32 -> vector<16x128xf32>
    %c57 = arith.constant 57 : index
    %c0_113 = arith.constant 0 : index
    %411 = vector.load %arg2[%c57, %c0_113] : memref<96x128xf32, #tpu.memory_space<vmem>>, vector<1x128xf32>
    %412 = vector.shape_cast %411 : vector<1x128xf32> to vector<128xf32>
    %413 = vector.shape_cast %412 : vector<128xf32> to vector<1x128xf32>
    %414 = vector.broadcast %413 : vector<1x128xf32> to vector<16x128xf32>
    %415 = arith.mulf %410, %414 : vector<16x128xf32>
    %416 = arith.addf %409, %415 : vector<16x128xf32>
    %c40_114 = arith.constant 40 : index
    %c0_115 = arith.constant 0 : index
    %417 = vector.load %arg6[%c40_114, %c0_115] : memref<128x128xf32, #tpu.memory_space<vmem>>, vector<16x128xf32>
    tpu.vector_store %arg6[%c40_114, %c0_115], %364 {strides = array<i32>} : memref<128x128xf32, #tpu.memory_space<vmem>>, vector<16x128xf32>,
    %c72 = arith.constant 72 : index
    %c0_116 = arith.constant 0 : index
    %418 = vector.load %arg6[%c72, %c0_116] : memref<128x128xf32, #tpu.memory_space<vmem>>, vector<16x128xf32>
    tpu.vector_store %arg6[%c72, %c0_116], %396 {strides = array<i32>} : memref<128x128xf32, #tpu.memory_space<vmem>>, vector<16x128xf32>,
    %c104 = arith.constant 104 : index
    %c0_117 = arith.constant 0 : index
    %419 = vector.load %arg6[%c104, %c0_117] : memref<128x128xf32, #tpu.memory_space<vmem>>, vector<16x128xf32>
    tpu.vector_store %arg6[%c104, %c0_117], %416 {strides = array<i32>} : memref<128x128xf32, #tpu.memory_space<vmem>>, vector<16x128xf32>,
    %cst_118 = arith.constant 0.000000e+00 : f32
    %420 = vector.broadcast %cst_118 : f32 to vector<16x128xf32>
    %c37_119 = arith.constant 37 : index
    %c0_120 = arith.constant 0 : index
    %421 = vector.load %arg6[%c37_119, %c0_120] : memref<128x128xf32, #tpu.memory_space<vmem>>, vector<16x128xf32>
    %c58 = arith.constant 58 : index
    %c0_121 = arith.constant 0 : index
    %422 = vector.load %arg2[%c58, %c0_121] : memref<96x128xf32, #tpu.memory_space<vmem>>, vector<1x128xf32>
    %423 = vector.shape_cast %422 : vector<1x128xf32> to vector<128xf32>
    %424 = vector.shape_cast %423 : vector<128xf32> to vector<1x128xf32>
    %425 = vector.broadcast %424 : vector<1x128xf32> to vector<16x128xf32>
    %426 = arith.mulf %421, %425 : vector<16x128xf32>
    %427 = arith.addf %420, %426 : vector<16x128xf32>
    %c38_122 = arith.constant 38 : index
    %c0_123 = arith.constant 0 : index
    %428 = vector.load %arg6[%c38_122, %c0_123] : memref<128x128xf32, #tpu.memory_space<vmem>>, vector<16x128xf32>
    %c59 = arith.constant 59 : index
    %c0_124 = arith.constant 0 : index
    %429 = vector.load %arg2[%c59, %c0_124] : memref<96x128xf32, #tpu.memory_space<vmem>>, vector<1x128xf32>
    %430 = vector.shape_cast %429 : vector<1x128xf32> to vector<128xf32>
    %431 = vector.shape_cast %430 : vector<128xf32> to vector<1x128xf32>
    %432 = vector.broadcast %431 : vector<1x128xf32> to vector<16x128xf32>
    %433 = arith.mulf %428, %432 : vector<16x128xf32>
    %434 = arith.addf %427, %433 : vector<16x128xf32>
    %c39_125 = arith.constant 39 : index
    %c0_126 = arith.constant 0 : index
    %435 = vector.load %arg6[%c39_125, %c0_126] : memref<128x128xf32, #tpu.memory_space<vmem>>, vector<16x128xf32>
    %c60 = arith.constant 60 : index
    %c0_127 = arith.constant 0 : index
    %436 = vector.load %arg2[%c60, %c0_127] : memref<96x128xf32, #tpu.memory_space<vmem>>, vector<1x128xf32>
    %437 = vector.shape_cast %436 : vector<1x128xf32> to vector<128xf32>
    %438 = vector.shape_cast %437 : vector<128xf32> to vector<1x128xf32>
    %439 = vector.broadcast %438 : vector<1x128xf32> to vector<16x128xf32>
    %440 = arith.mulf %435, %439 : vector<16x128xf32>
    %441 = arith.addf %434, %440 : vector<16x128xf32>
    %c40_128 = arith.constant 40 : index
    %c0_129 = arith.constant 0 : index
    %442 = vector.load %arg6[%c40_128, %c0_129] : memref<128x128xf32, #tpu.memory_space<vmem>>, vector<16x128xf32>
    %c61 = arith.constant 61 : index
    %c0_130 = arith.constant 0 : index
    %443 = vector.load %arg2[%c61, %c0_130] : memref<96x128xf32, #tpu.memory_space<vmem>>, vector<1x128xf32>
    %444 = vector.shape_cast %443 : vector<1x128xf32> to vector<128xf32>
    %445 = vector.shape_cast %444 : vector<128xf32> to vector<1x128xf32>
    %446 = vector.broadcast %445 : vector<1x128xf32> to vector<16x128xf32>
    %447 = arith.mulf %442, %446 : vector<16x128xf32>
    %448 = arith.addf %441, %447 : vector<16x128xf32>
    %c41_131 = arith.constant 41 : index
    %c0_132 = arith.constant 0 : index
    %449 = vector.load %arg6[%c41_131, %c0_132] : memref<128x128xf32, #tpu.memory_space<vmem>>, vector<16x128xf32>
    %c62 = arith.constant 62 : index
    %c0_133 = arith.constant 0 : index
    %450 = vector.load %arg2[%c62, %c0_133] : memref<96x128xf32, #tpu.memory_space<vmem>>, vector<1x128xf32>
    %451 = vector.shape_cast %450 : vector<1x128xf32> to vector<128xf32>
    %452 = vector.shape_cast %451 : vector<128xf32> to vector<1x128xf32>
    %453 = vector.broadcast %452 : vector<1x128xf32> to vector<16x128xf32>
    %454 = arith.mulf %449, %453 : vector<16x128xf32>
    %455 = arith.addf %448, %454 : vector<16x128xf32>
    %c42_134 = arith.constant 42 : index
    %c0_135 = arith.constant 0 : index
    %456 = vector.load %arg6[%c42_134, %c0_135] : memref<128x128xf32, #tpu.memory_space<vmem>>, vector<16x128xf32>
    %c63 = arith.constant 63 : index
    %c0_136 = arith.constant 0 : index
    %457 = vector.load %arg2[%c63, %c0_136] : memref<96x128xf32, #tpu.memory_space<vmem>>, vector<1x128xf32>
    %458 = vector.shape_cast %457 : vector<1x128xf32> to vector<128xf32>
    %459 = vector.shape_cast %458 : vector<128xf32> to vector<1x128xf32>
    %460 = vector.broadcast %459 : vector<1x128xf32> to vector<16x128xf32>
    %461 = arith.mulf %456, %460 : vector<16x128xf32>
    %462 = arith.addf %455, %461 : vector<16x128xf32>
    %c43_137 = arith.constant 43 : index
    %c0_138 = arith.constant 0 : index
    %463 = vector.load %arg6[%c43_137, %c0_138] : memref<128x128xf32, #tpu.memory_space<vmem>>, vector<16x128xf32>
    %c64_139 = arith.constant 64 : index
    %c0_140 = arith.constant 0 : index
    %464 = vector.load %arg2[%c64_139, %c0_140] : memref<96x128xf32, #tpu.memory_space<vmem>>, vector<1x128xf32>
    %465 = vector.shape_cast %464 : vector<1x128xf32> to vector<128xf32>
    %466 = vector.shape_cast %465 : vector<128xf32> to vector<1x128xf32>
    %467 = vector.broadcast %466 : vector<1x128xf32> to vector<16x128xf32>
    %468 = arith.mulf %463, %467 : vector<16x128xf32>
    %469 = arith.addf %462, %468 : vector<16x128xf32>
    %cst_141 = arith.constant 0.000000e+00 : f32
    %470 = vector.broadcast %cst_141 : f32 to vector<16x128xf32>
    %c67 = arith.constant 67 : index
    %c0_142 = arith.constant 0 : index
    %471 = vector.load %arg6[%c67, %c0_142] : memref<128x128xf32, #tpu.memory_space<vmem>>, vector<16x128xf32>
    %c65 = arith.constant 65 : index
    %c0_143 = arith.constant 0 : index
    %472 = vector.load %arg2[%c65, %c0_143] : memref<96x128xf32, #tpu.memory_space<vmem>>, vector<1x128xf32>
    %473 = vector.shape_cast %472 : vector<1x128xf32> to vector<128xf32>
    %474 = vector.shape_cast %473 : vector<128xf32> to vector<1x128xf32>
    %475 = vector.broadcast %474 : vector<1x128xf32> to vector<16x128xf32>
    %476 = arith.mulf %471, %475 : vector<16x128xf32>
    %477 = arith.addf %470, %476 : vector<16x128xf32>
    %c68 = arith.constant 68 : index
    %c0_144 = arith.constant 0 : index
    %478 = vector.load %arg6[%c68, %c0_144] : memref<128x128xf32, #tpu.memory_space<vmem>>, vector<16x128xf32>
    %c66 = arith.constant 66 : index
    %c0_145 = arith.constant 0 : index
    %479 = vector.load %arg2[%c66, %c0_145] : memref<96x128xf32, #tpu.memory_space<vmem>>, vector<1x128xf32>
    %480 = vector.shape_cast %479 : vector<1x128xf32> to vector<128xf32>
    %481 = vector.shape_cast %480 : vector<128xf32> to vector<1x128xf32>
    %482 = vector.broadcast %481 : vector<1x128xf32> to vector<16x128xf32>
    %483 = arith.mulf %478, %482 : vector<16x128xf32>
    %484 = arith.addf %477, %483 : vector<16x128xf32>
    %c69 = arith.constant 69 : index
    %c0_146 = arith.constant 0 : index
    %485 = vector.load %arg6[%c69, %c0_146] : memref<128x128xf32, #tpu.memory_space<vmem>>, vector<16x128xf32>
    %c67_147 = arith.constant 67 : index
    %c0_148 = arith.constant 0 : index
    %486 = vector.load %arg2[%c67_147, %c0_148] : memref<96x128xf32, #tpu.memory_space<vmem>>, vector<1x128xf32>
    %487 = vector.shape_cast %486 : vector<1x128xf32> to vector<128xf32>
    %488 = vector.shape_cast %487 : vector<128xf32> to vector<1x128xf32>
    %489 = vector.broadcast %488 : vector<1x128xf32> to vector<16x128xf32>
    %490 = arith.mulf %485, %489 : vector<16x128xf32>
    %491 = arith.addf %484, %490 : vector<16x128xf32>
    %c70 = arith.constant 70 : index
    %c0_149 = arith.constant 0 : index
    %492 = vector.load %arg6[%c70, %c0_149] : memref<128x128xf32, #tpu.memory_space<vmem>>, vector<16x128xf32>
    %c68_150 = arith.constant 68 : index
    %c0_151 = arith.constant 0 : index
    %493 = vector.load %arg2[%c68_150, %c0_151] : memref<96x128xf32, #tpu.memory_space<vmem>>, vector<1x128xf32>
    %494 = vector.shape_cast %493 : vector<1x128xf32> to vector<128xf32>
    %495 = vector.shape_cast %494 : vector<128xf32> to vector<1x128xf32>
    %496 = vector.broadcast %495 : vector<1x128xf32> to vector<16x128xf32>
    %497 = arith.mulf %492, %496 : vector<16x128xf32>
    %498 = arith.addf %491, %497 : vector<16x128xf32>
    %c71 = arith.constant 71 : index
    %c0_152 = arith.constant 0 : index
    %499 = vector.load %arg6[%c71, %c0_152] : memref<128x128xf32, #tpu.memory_space<vmem>>, vector<16x128xf32>
    %c69_153 = arith.constant 69 : index
    %c0_154 = arith.constant 0 : index
    %500 = vector.load %arg2[%c69_153, %c0_154] : memref<96x128xf32, #tpu.memory_space<vmem>>, vector<1x128xf32>
    %501 = vector.shape_cast %500 : vector<1x128xf32> to vector<128xf32>
    %502 = vector.shape_cast %501 : vector<128xf32> to vector<1x128xf32>
    %503 = vector.broadcast %502 : vector<1x128xf32> to vector<16x128xf32>
    %504 = arith.mulf %499, %503 : vector<16x128xf32>
    %505 = arith.addf %498, %504 : vector<16x128xf32>
    %c72_155 = arith.constant 72 : index
    %c0_156 = arith.constant 0 : index
    %506 = vector.load %arg6[%c72_155, %c0_156] : memref<128x128xf32, #tpu.memory_space<vmem>>, vector<16x128xf32>
    %c70_157 = arith.constant 70 : index
    %c0_158 = arith.constant 0 : index
    %507 = vector.load %arg2[%c70_157, %c0_158] : memref<96x128xf32, #tpu.memory_space<vmem>>, vector<1x128xf32>
    %508 = vector.shape_cast %507 : vector<1x128xf32> to vector<128xf32>
    %509 = vector.shape_cast %508 : vector<128xf32> to vector<1x128xf32>
    %510 = vector.broadcast %509 : vector<1x128xf32> to vector<16x128xf32>
    %511 = arith.mulf %506, %510 : vector<16x128xf32>
    %512 = arith.addf %505, %511 : vector<16x128xf32>
    %c73 = arith.constant 73 : index
    %c0_159 = arith.constant 0 : index
    %513 = vector.load %arg6[%c73, %c0_159] : memref<128x128xf32, #tpu.memory_space<vmem>>, vector<16x128xf32>
    %c71_160 = arith.constant 71 : index
    %c0_161 = arith.constant 0 : index
    %514 = vector.load %arg2[%c71_160, %c0_161] : memref<96x128xf32, #tpu.memory_space<vmem>>, vector<1x128xf32>
    %515 = vector.shape_cast %514 : vector<1x128xf32> to vector<128xf32>
    %516 = vector.shape_cast %515 : vector<128xf32> to vector<1x128xf32>
    %517 = vector.broadcast %516 : vector<1x128xf32> to vector<16x128xf32>
    %518 = arith.mulf %513, %517 : vector<16x128xf32>
    %519 = arith.addf %512, %518 : vector<16x128xf32>
    %c74 = arith.constant 74 : index
    %c0_162 = arith.constant 0 : index
    %520 = vector.load %arg6[%c74, %c0_162] : memref<128x128xf32, #tpu.memory_space<vmem>>, vector<16x128xf32>
    %c72_163 = arith.constant 72 : index
    %c0_164 = arith.constant 0 : index
    %521 = vector.load %arg2[%c72_163, %c0_164] : memref<96x128xf32, #tpu.memory_space<vmem>>, vector<1x128xf32>
    %522 = vector.shape_cast %521 : vector<1x128xf32> to vector<128xf32>
    %523 = vector.shape_cast %522 : vector<128xf32> to vector<1x128xf32>
    %524 = vector.broadcast %523 : vector<1x128xf32> to vector<16x128xf32>
    %525 = arith.mulf %520, %524 : vector<16x128xf32>
    %526 = arith.addf %519, %525 : vector<16x128xf32>
    %c75 = arith.constant 75 : index
    %c0_165 = arith.constant 0 : index
    %527 = vector.load %arg6[%c75, %c0_165] : memref<128x128xf32, #tpu.memory_space<vmem>>, vector<16x128xf32>
    %c73_166 = arith.constant 73 : index
    %c0_167 = arith.constant 0 : index
    %528 = vector.load %arg2[%c73_166, %c0_167] : memref<96x128xf32, #tpu.memory_space<vmem>>, vector<1x128xf32>
    %529 = vector.shape_cast %528 : vector<1x128xf32> to vector<128xf32>
    %530 = vector.shape_cast %529 : vector<128xf32> to vector<1x128xf32>
    %531 = vector.broadcast %530 : vector<1x128xf32> to vector<16x128xf32>
    %532 = arith.mulf %527, %531 : vector<16x128xf32>
    %533 = arith.addf %526, %532 : vector<16x128xf32>
    %c76 = arith.constant 76 : index
    %c0_168 = arith.constant 0 : index
    %534 = vector.load %arg6[%c76, %c0_168] : memref<128x128xf32, #tpu.memory_space<vmem>>, vector<16x128xf32>
    %c74_169 = arith.constant 74 : index
    %c0_170 = arith.constant 0 : index
    %535 = vector.load %arg2[%c74_169, %c0_170] : memref<96x128xf32, #tpu.memory_space<vmem>>, vector<1x128xf32>
    %536 = vector.shape_cast %535 : vector<1x128xf32> to vector<128xf32>
    %537 = vector.shape_cast %536 : vector<128xf32> to vector<1x128xf32>
    %538 = vector.broadcast %537 : vector<1x128xf32> to vector<16x128xf32>
    %539 = arith.mulf %534, %538 : vector<16x128xf32>
    %540 = arith.addf %533, %539 : vector<16x128xf32>
    %c77 = arith.constant 77 : index
    %c0_171 = arith.constant 0 : index
    %541 = vector.load %arg6[%c77, %c0_171] : memref<128x128xf32, #tpu.memory_space<vmem>>, vector<16x128xf32>
    %c75_172 = arith.constant 75 : index
    %c0_173 = arith.constant 0 : index
    %542 = vector.load %arg2[%c75_172, %c0_173] : memref<96x128xf32, #tpu.memory_space<vmem>>, vector<1x128xf32>
    %543 = vector.shape_cast %542 : vector<1x128xf32> to vector<128xf32>
    %544 = vector.shape_cast %543 : vector<128xf32> to vector<1x128xf32>
    %545 = vector.broadcast %544 : vector<1x128xf32> to vector<16x128xf32>
    %546 = arith.mulf %541, %545 : vector<16x128xf32>
    %547 = arith.addf %540, %546 : vector<16x128xf32>
    %cst_174 = arith.constant 0.000000e+00 : f32
    %548 = vector.broadcast %cst_174 : f32 to vector<16x128xf32>
    %c97 = arith.constant 97 : index
    %c0_175 = arith.constant 0 : index
    %549 = vector.load %arg6[%c97, %c0_175] : memref<128x128xf32, #tpu.memory_space<vmem>>, vector<16x128xf32>
    %c76_176 = arith.constant 76 : index
    %c0_177 = arith.constant 0 : index
    %550 = vector.load %arg2[%c76_176, %c0_177] : memref<96x128xf32, #tpu.memory_space<vmem>>, vector<1x128xf32>
    %551 = vector.shape_cast %550 : vector<1x128xf32> to vector<128xf32>
    %552 = vector.shape_cast %551 : vector<128xf32> to vector<1x128xf32>
    %553 = vector.broadcast %552 : vector<1x128xf32> to vector<16x128xf32>
    %554 = arith.mulf %549, %553 : vector<16x128xf32>
    %555 = arith.addf %548, %554 : vector<16x128xf32>
    %c98 = arith.constant 98 : index
    %c0_178 = arith.constant 0 : index
    %556 = vector.load %arg6[%c98, %c0_178] : memref<128x128xf32, #tpu.memory_space<vmem>>, vector<16x128xf32>
    %c77_179 = arith.constant 77 : index
    %c0_180 = arith.constant 0 : index
    %557 = vector.load %arg2[%c77_179, %c0_180] : memref<96x128xf32, #tpu.memory_space<vmem>>, vector<1x128xf32>
    %558 = vector.shape_cast %557 : vector<1x128xf32> to vector<128xf32>
    %559 = vector.shape_cast %558 : vector<128xf32> to vector<1x128xf32>
    %560 = vector.broadcast %559 : vector<1x128xf32> to vector<16x128xf32>
    %561 = arith.mulf %556, %560 : vector<16x128xf32>
    %562 = arith.addf %555, %561 : vector<16x128xf32>
    %c99 = arith.constant 99 : index
    %c0_181 = arith.constant 0 : index
    %563 = vector.load %arg6[%c99, %c0_181] : memref<128x128xf32, #tpu.memory_space<vmem>>, vector<16x128xf32>
    %c78 = arith.constant 78 : index
    %c0_182 = arith.constant 0 : index
    %564 = vector.load %arg2[%c78, %c0_182] : memref<96x128xf32, #tpu.memory_space<vmem>>, vector<1x128xf32>
    %565 = vector.shape_cast %564 : vector<1x128xf32> to vector<128xf32>
    %566 = vector.shape_cast %565 : vector<128xf32> to vector<1x128xf32>
    %567 = vector.broadcast %566 : vector<1x128xf32> to vector<16x128xf32>
    %568 = arith.mulf %563, %567 : vector<16x128xf32>
    %569 = arith.addf %562, %568 : vector<16x128xf32>
    %c100 = arith.constant 100 : index
    %c0_183 = arith.constant 0 : index
    %570 = vector.load %arg6[%c100, %c0_183] : memref<128x128xf32, #tpu.memory_space<vmem>>, vector<16x128xf32>
    %c79 = arith.constant 79 : index
    %c0_184 = arith.constant 0 : index
    %571 = vector.load %arg2[%c79, %c0_184] : memref<96x128xf32, #tpu.memory_space<vmem>>, vector<1x128xf32>
    %572 = vector.shape_cast %571 : vector<1x128xf32> to vector<128xf32>
    %573 = vector.shape_cast %572 : vector<128xf32> to vector<1x128xf32>
    %574 = vector.broadcast %573 : vector<1x128xf32> to vector<16x128xf32>
    %575 = arith.mulf %570, %574 : vector<16x128xf32>
    %576 = arith.addf %569, %575 : vector<16x128xf32>
    %c101 = arith.constant 101 : index
    %c0_185 = arith.constant 0 : index
    %577 = vector.load %arg6[%c101, %c0_185] : memref<128x128xf32, #tpu.memory_space<vmem>>, vector<16x128xf32>
    %c80 = arith.constant 80 : index
    %c0_186 = arith.constant 0 : index
    %578 = vector.load %arg2[%c80, %c0_186] : memref<96x128xf32, #tpu.memory_space<vmem>>, vector<1x128xf32>
    %579 = vector.shape_cast %578 : vector<1x128xf32> to vector<128xf32>
    %580 = vector.shape_cast %579 : vector<128xf32> to vector<1x128xf32>
    %581 = vector.broadcast %580 : vector<1x128xf32> to vector<16x128xf32>
    %582 = arith.mulf %577, %581 : vector<16x128xf32>
    %583 = arith.addf %576, %582 : vector<16x128xf32>
    %c102 = arith.constant 102 : index
    %c0_187 = arith.constant 0 : index
    %584 = vector.load %arg6[%c102, %c0_187] : memref<128x128xf32, #tpu.memory_space<vmem>>, vector<16x128xf32>
    %c81 = arith.constant 81 : index
    %c0_188 = arith.constant 0 : index
    %585 = vector.load %arg2[%c81, %c0_188] : memref<96x128xf32, #tpu.memory_space<vmem>>, vector<1x128xf32>
    %586 = vector.shape_cast %585 : vector<1x128xf32> to vector<128xf32>
    %587 = vector.shape_cast %586 : vector<128xf32> to vector<1x128xf32>
    %588 = vector.broadcast %587 : vector<1x128xf32> to vector<16x128xf32>
    %589 = arith.mulf %584, %588 : vector<16x128xf32>
    %590 = arith.addf %583, %589 : vector<16x128xf32>
    %c103 = arith.constant 103 : index
    %c0_189 = arith.constant 0 : index
    %591 = vector.load %arg6[%c103, %c0_189] : memref<128x128xf32, #tpu.memory_space<vmem>>, vector<16x128xf32>
    %c82 = arith.constant 82 : index
    %c0_190 = arith.constant 0 : index
    %592 = vector.load %arg2[%c82, %c0_190] : memref<96x128xf32, #tpu.memory_space<vmem>>, vector<1x128xf32>
    %593 = vector.shape_cast %592 : vector<1x128xf32> to vector<128xf32>
    %594 = vector.shape_cast %593 : vector<128xf32> to vector<1x128xf32>
    %595 = vector.broadcast %594 : vector<1x128xf32> to vector<16x128xf32>
    %596 = arith.mulf %591, %595 : vector<16x128xf32>
    %597 = arith.addf %590, %596 : vector<16x128xf32>
    %c104_191 = arith.constant 104 : index
    %c0_192 = arith.constant 0 : index
    %598 = vector.load %arg6[%c104_191, %c0_192] : memref<128x128xf32, #tpu.memory_space<vmem>>, vector<16x128xf32>
    %c83 = arith.constant 83 : index
    %c0_193 = arith.constant 0 : index
    %599 = vector.load %arg2[%c83, %c0_193] : memref<96x128xf32, #tpu.memory_space<vmem>>, vector<1x128xf32>
    %600 = vector.shape_cast %599 : vector<1x128xf32> to vector<128xf32>
    %601 = vector.shape_cast %600 : vector<128xf32> to vector<1x128xf32>
    %602 = vector.broadcast %601 : vector<1x128xf32> to vector<16x128xf32>
    %603 = arith.mulf %598, %602 : vector<16x128xf32>
    %604 = arith.addf %597, %603 : vector<16x128xf32>
    %c105 = arith.constant 105 : index
    %c0_194 = arith.constant 0 : index
    %605 = vector.load %arg6[%c105, %c0_194] : memref<128x128xf32, #tpu.memory_space<vmem>>, vector<16x128xf32>
    %c84 = arith.constant 84 : index
    %c0_195 = arith.constant 0 : index
    %606 = vector.load %arg2[%c84, %c0_195] : memref<96x128xf32, #tpu.memory_space<vmem>>, vector<1x128xf32>
    %607 = vector.shape_cast %606 : vector<1x128xf32> to vector<128xf32>
    %608 = vector.shape_cast %607 : vector<128xf32> to vector<1x128xf32>
    %609 = vector.broadcast %608 : vector<1x128xf32> to vector<16x128xf32>
    %610 = arith.mulf %605, %609 : vector<16x128xf32>
    %611 = arith.addf %604, %610 : vector<16x128xf32>
    %c106 = arith.constant 106 : index
    %c0_196 = arith.constant 0 : index
    %612 = vector.load %arg6[%c106, %c0_196] : memref<128x128xf32, #tpu.memory_space<vmem>>, vector<16x128xf32>
    %c85 = arith.constant 85 : index
    %c0_197 = arith.constant 0 : index
    %613 = vector.load %arg2[%c85, %c0_197] : memref<96x128xf32, #tpu.memory_space<vmem>>, vector<1x128xf32>
    %614 = vector.shape_cast %613 : vector<1x128xf32> to vector<128xf32>
    %615 = vector.shape_cast %614 : vector<128xf32> to vector<1x128xf32>
    %616 = vector.broadcast %615 : vector<1x128xf32> to vector<16x128xf32>
    %617 = arith.mulf %612, %616 : vector<16x128xf32>
    %618 = arith.addf %611, %617 : vector<16x128xf32>
    %c107 = arith.constant 107 : index
    %c0_198 = arith.constant 0 : index
    %619 = vector.load %arg6[%c107, %c0_198] : memref<128x128xf32, #tpu.memory_space<vmem>>, vector<16x128xf32>
    %c86 = arith.constant 86 : index
    %c0_199 = arith.constant 0 : index
    %620 = vector.load %arg2[%c86, %c0_199] : memref<96x128xf32, #tpu.memory_space<vmem>>, vector<1x128xf32>
    %621 = vector.shape_cast %620 : vector<1x128xf32> to vector<128xf32>
    %622 = vector.shape_cast %621 : vector<128xf32> to vector<1x128xf32>
    %623 = vector.broadcast %622 : vector<1x128xf32> to vector<16x128xf32>
    %624 = arith.mulf %619, %623 : vector<16x128xf32>
    %625 = arith.addf %618, %624 : vector<16x128xf32>
    %c108 = arith.constant 108 : index
    %c0_200 = arith.constant 0 : index
    %626 = vector.load %arg6[%c108, %c0_200] : memref<128x128xf32, #tpu.memory_space<vmem>>, vector<16x128xf32>
    %c87 = arith.constant 87 : index
    %c0_201 = arith.constant 0 : index
    %627 = vector.load %arg2[%c87, %c0_201] : memref<96x128xf32, #tpu.memory_space<vmem>>, vector<1x128xf32>
    %628 = vector.shape_cast %627 : vector<1x128xf32> to vector<128xf32>
    %629 = vector.shape_cast %628 : vector<128xf32> to vector<1x128xf32>
    %630 = vector.broadcast %629 : vector<1x128xf32> to vector<16x128xf32>
    %631 = arith.mulf %626, %630 : vector<16x128xf32>
    %632 = arith.addf %625, %631 : vector<16x128xf32>
    %c109 = arith.constant 109 : index
    %c0_202 = arith.constant 0 : index
    %633 = vector.load %arg6[%c109, %c0_202] : memref<128x128xf32, #tpu.memory_space<vmem>>, vector<16x128xf32>
    %c88_203 = arith.constant 88 : index
    %c0_204 = arith.constant 0 : index
    %634 = vector.load %arg2[%c88_203, %c0_204] : memref<96x128xf32, #tpu.memory_space<vmem>>, vector<1x128xf32>
    %635 = vector.shape_cast %634 : vector<1x128xf32> to vector<128xf32>
    %636 = vector.shape_cast %635 : vector<128xf32> to vector<1x128xf32>
    %637 = vector.broadcast %636 : vector<1x128xf32> to vector<16x128xf32>
    %638 = arith.mulf %633, %637 : vector<16x128xf32>
    %639 = arith.addf %632, %638 : vector<16x128xf32>
    %c110 = arith.constant 110 : index
    %c0_205 = arith.constant 0 : index
    %640 = vector.load %arg6[%c110, %c0_205] : memref<128x128xf32, #tpu.memory_space<vmem>>, vector<16x128xf32>
    %c89 = arith.constant 89 : index
    %c0_206 = arith.constant 0 : index
    %641 = vector.load %arg2[%c89, %c0_206] : memref<96x128xf32, #tpu.memory_space<vmem>>, vector<1x128xf32>
    %642 = vector.shape_cast %641 : vector<1x128xf32> to vector<128xf32>
    %643 = vector.shape_cast %642 : vector<128xf32> to vector<1x128xf32>
    %644 = vector.broadcast %643 : vector<1x128xf32> to vector<16x128xf32>
    %645 = arith.mulf %640, %644 : vector<16x128xf32>
    %646 = arith.addf %639, %645 : vector<16x128xf32>
    %c111 = arith.constant 111 : index
    %c0_207 = arith.constant 0 : index
    %647 = vector.load %arg6[%c111, %c0_207] : memref<128x128xf32, #tpu.memory_space<vmem>>, vector<16x128xf32>
    %c90 = arith.constant 90 : index
    %c0_208 = arith.constant 0 : index
    %648 = vector.load %arg2[%c90, %c0_208] : memref<96x128xf32, #tpu.memory_space<vmem>>, vector<1x128xf32>
    %649 = vector.shape_cast %648 : vector<1x128xf32> to vector<128xf32>
    %650 = vector.shape_cast %649 : vector<128xf32> to vector<1x128xf32>
    %651 = vector.broadcast %650 : vector<1x128xf32> to vector<16x128xf32>
    %652 = arith.mulf %647, %651 : vector<16x128xf32>
    %653 = arith.addf %646, %652 : vector<16x128xf32>
    %c4_209 = arith.constant 4 : index
    %c0_210 = arith.constant 0 : index
    %654 = vector.load %arg3[%c4_209, %c0_210] : memref<8x128xf32, #tpu.memory_space<vmem>>, vector<1x128xf32>
    %655 = vector.shape_cast %654 : vector<1x128xf32> to vector<128xf32>
    %656 = vector.shape_cast %655 : vector<128xf32> to vector<1x128xf32>
    %657 = vector.broadcast %656 : vector<1x128xf32> to vector<16x128xf32>
    %658 = arith.addf %192, %657 : vector<16x128xf32>
    %659 = arith.addf %658, %469 : vector<16x128xf32>
    %660 = arith.addf %659, %547 : vector<16x128xf32>
    %661 = arith.addf %660, %653 : vector<16x128xf32>
    %c0_211 = arith.constant 0 : index
    %c0_212 = arith.constant 0 : index
    %662 = vector.load %arg4[%c0_211, %c0_212] : memref<128x128xf32, #tpu.memory_space<vmem>>, vector<128x128xf32>
    %cst_213 = arith.constant dense<0.000000e+00> : vector<16x128xf32>
    %663 = tpu.matmul %661, %662, %cst_213 {dimension_numbers = #tpu.dot_dimension_numbers<[1], [0], [0], [1], [0, 0, 1, 1], [], []>} : vector<16x128xf32>, vector<128x128xf32>, vector<16x128xf32> -> vector<16x128xf32>
    %c5_214 = arith.constant 5 : index
    %c0_215 = arith.constant 0 : index
    %664 = vector.load %arg3[%c5_214, %c0_215] : memref<8x128xf32, #tpu.memory_space<vmem>>, vector<1x128xf32>
    %665 = vector.shape_cast %664 : vector<1x128xf32> to vector<128xf32>
    %666 = vector.shape_cast %665 : vector<128xf32> to vector<1x128xf32>
    %667 = vector.broadcast %666 : vector<1x128xf32> to vector<16x128xf32>
    %668 = arith.addf %663, %667 : vector<16x128xf32>
    %669 = arith.mulf %668, %10 : vector<16x128xf32>
    %670 = vector.shape_cast %669 : vector<16x128xf32> to vector<1x16x128xf32>
    %c0_216 = arith.constant 0 : index
    %c0_217 = arith.constant 0 : index
    %c0_218 = arith.constant 0 : index
    %671 = vector.load %arg5[%c0_216, %c0_217, %c0_218] : memref<1x16x128xf32, #tpu.memory_space<vmem>>, vector<1x16x128xf32>
    tpu.vector_store %arg5[%c0_216, %c0_217, %c0_218], %670 {strides = array<i32>} : memref<1x16x128xf32, #tpu.memory_space<vmem>>, vector<1x16x128xf32>,
    return
  }
  func.func @transform_0(%arg0: i32) -> (i32, i32, i32) {
    %c0_i32 = arith.constant 0 : i32
    %c0_i32_0 = arith.constant 0 : i32
    %c0_i32_1 = arith.constant 0 : i32
    return %arg0, %c0_i32, %c0_i32_0 : i32, i32, i32
  }
  func.func @transform_1(%arg0: i32) -> (i32, i32) {
    %c0_i32 = arith.constant 0 : i32
    %c0_i32_0 = arith.constant 0 : i32
    %c0_i32_1 = arith.constant 0 : i32
    return %c0_i32, %c0_i32_0 : i32, i32
  }
  func.func @transform_2(%arg0: i32) -> (i32, i32) {
    %c0_i32 = arith.constant 0 : i32
    %c0_i32_0 = arith.constant 0 : i32
    %c0_i32_1 = arith.constant 0 : i32
    return %c0_i32, %c0_i32_0 : i32, i32
  }
  func.func @transform_3(%arg0: i32) -> (i32, i32) {
    %c0_i32 = arith.constant 0 : i32
    %c0_i32_0 = arith.constant 0 : i32
    %c0_i32_1 = arith.constant 0 : i32
    return %c0_i32, %c0_i32_0 : i32, i32
  }
  func.func @transform_4(%arg0: i32) -> (i32, i32, i32) {
    %c0_i32 = arith.constant 0 : i32
    %c0_i32_0 = arith.constant 0 : i32
    %c0_i32_1 = arith.constant 0 : i32
    return %arg0, %c0_i32, %c0_i32_0 : i32, i32, i32
  }
}

</mosaic_0001>

<llo_original>
// kernel: tpu_custom_call.1
$region0: #{tpu_custom_call.1}
  #allocation0 [shape = 'u32[]', space=smem, size = 0x4, offset = 0x4, fixed_abs, tag = 'smem constant byte address 0x4 - core index']
  #allocation1 [shape = 'u32[144,128]{1,0:T(1,128)}', space=vmem, size = 0x12000, scoped, tag = 'internal scratch']
  #allocation2 [shape = 'f32[128,128]{1,0:T(8,128)}', space=vmem, size = 0x10000, scoped, tag = 'scratch operand']
  %s0 = inlined_call_operand.hbm [shape: f32[2,16,128], index: 0, kind: input, shape index: {}]
  %s1 = inlined_call_operand.hbm [shape: f32[96,128], index: 1, kind: input, shape index: {}]
  %s2 = inlined_call_operand.hbm [shape: f32[8,128], index: 2, kind: input, shape index: {}]
  %s3 = inlined_call_operand.hbm [shape: f32[128,128], index: 3, kind: input, shape index: {}]
  %s4 = inlined_call_operand.hbm [shape: f32[2,16,128], index: 4, kind: output, shape index: {}]
  %s5 = sld [smem:[#allocation0]]
  $region65: #{tpu_custom_call.1} parent=0
    _
  %s7 = ssub.s32 1, %s5
  %s8 = scalar_select 0, %s7, %s5
  $region1: #{tpu_custom_call.1} parent=0
    #allocation3 [shape = 'u8[16384]{0}', space=vmem, size = 0x4000, scoped, tag = 'input window, operand 0']
    #allocation4 [shape = 's32[2]{0}', space=sflag, size = 0x8, scoped, tag = 'scoped memory for tpu_custom_call.1']
    #allocation5 [shape = 's32[2]{0}', space=sflag, size = 0x8, scoped, tag = 'scoped memory for tpu_custom_call.1']
    #allocation6 [shape = 'u8[49152]{0}', space=vmem, size = 0xc000, scoped, tag = 'input window, operand 1, single buffered']
    #allocation7 [shape = 's32[1]{0}', space=sflag, size = 0x4, scoped, tag = 'scoped memory for tpu_custom_call.1']
    #allocation8 [shape = 'u8[4096]{0}', space=vmem, size = 0x1000, scoped, tag = 'input window, operand 2, single buffered']
    #allocation9 [shape = 'u8[65536]{0}', space=vmem, size = 0x10000, scoped, tag = 'input window, operand 3, single buffered']
    #allocation10 [shape = 's32[1]{0}', space=sflag, size = 0x4, scoped, tag = 'scoped memory for tpu_custom_call.1']
    #allocation11 [shape = 'u8[16384]{0}', space=vmem, size = 0x4000, scoped, tag = 'output window, operand 0']
    %9 = vsyncpa [#allocation4], 0
    %s10 = scalar_lea.sflag [#allocation4], 1
    %11 = vsyncpa %s10, 0
    %12 = vsyncpa [#allocation7], 0
    %13 = vsyncpa [#allocation10], 0
    %14 = vsyncpa [#allocation5], 0
    %s15 = scalar_lea.sflag [#allocation5], 1
    %16 = vsyncpa %s15, 0
    loop: start=0, step=1, limit=4
    $region2: #{tpu_custom_call.1} parent=1 // loop_pre_header
      _
    $region3: #{tpu_custom_call.1} parent=1 // loop_header
      %s18 = sphi 0, %s22
      %p19 = scmp.ge.s32.totalorder %s18, 4
      %s28 = sphi 0, %s30
      %s31 = sphi 0, %s28
      %s32 = sphi 0, %s31
      %s48 = sphi 0, %s32
      %s52 = sphi 0, %s52
      %s54 = sphi 0, %s52
      %s55 = sphi 0, %s54
      %s69 = sphi 0, %s55
      %s73 = sphi 0, %s73
      %s75 = sphi 0, %s73
      %s76 = sphi 0, %s75
      %s90 = sphi 0, %s76
      %s94 = sphi 0, %s94
      %s96 = sphi 0, %s94
      %s97 = sphi 0, %s96
      %s111 = sphi 0, %s97
      %s117 = sphi 0, %s119
      %s120 = sphi 0, %s117
      %s121 = sphi 0, %s120
      %s137 = sphi 0, %s121
    $region4: #{tpu_custom_call.1} parent=1 // loop_header_branch
      %21 = sbr.rel (%p19) target = $region8
    $region5: #{tpu_custom_call.1} parent=1 // loop_body
      %s23 = ssub.s32 %s18, 1
      %s24 = ssub.s32 %s18, 2
      %s25 = sadd.s32 %s18, 1
      %s26 = ssub.s32 %s18, %s25
      %p27 = scmp.eq.s32.totalorder %s26, 0
      %s29 = sadd.s32 %s28, 1
      %s30 = scalar_select %p27, %s28, %s29
      %p33 = pneg %p27
      %p34 = scmp.eq.s32.totalorder %s18, 1
      %p35 = por %p33, %p34
      %p36 = scmp.ne.s32.totalorder %s28, %s31
      %p37 = scmp.eq.s32.totalorder %s18, 0
      %p38 = por %p36, %p37
      %p39 = scmp.ne.s32.totalorder %s28, %s31
      %p40 = scmp.eq.s32.totalorder %s23, 1
      %p41 = por %p39, %p40
      %p42 = scmp.ne.s32.totalorder %s31, %s32
      %p43 = scmp.eq.s32.totalorder %s23, 0
      %p44 = por %p42, %p43
      %p45 = scmp.ne.s32.totalorder %s31, %s32
      %p46 = scmp.eq.s32.totalorder %s24, 1
      %p47 = por %p45, %p46
      %p49 = scmp.ne.s32.totalorder %s32, %s48
      %p50 = scmp.eq.s32.totalorder %s24, 0
      %p51 = por %p49, %p50
      %s53 = sadd.s32 %s52, 1
      %p56 = scmp.eq.s32.totalorder %s18, 1
      %p57 = scmp.ne.s32.totalorder %s52, %s54
      %p58 = scmp.eq.s32.totalorder %s18, 0
      %p59 = por %p57, %p58
      %p60 = scmp.ne.s32.totalorder %s52, %s54
      %p61 = scmp.eq.s32.totalorder %s23, 1
      %p62 = por %p60, %p61
      %p63 = scmp.ne.s32.totalorder %s54, %s55
      %p64 = scmp.eq.s32.totalorder %s23, 0
      %p65 = por %p63, %p64
      %p66 = scmp.ne.s32.totalorder %s54, %s55
      %p67 = scmp.eq.s32.totalorder %s24, 1
      %p68 = por %p66, %p67
      %p70 = scmp.ne.s32.totalorder %s55, %s69
      %p71 = scmp.eq.s32.totalorder %s24, 0
      %p72 = por %p70, %p71
      %s74 = sadd.s32 %s73, 1
      %p77 = scmp.eq.s32.totalorder %s18, 1
      %p78 = scmp.ne.s32.totalorder %s73, %s75
      %p79 = scmp.eq.s32.totalorder %s18, 0
      %p80 = por %p78, %p79
      %p81 = scmp.ne.s32.totalorder %s73, %s75
      %p82 = scmp.eq.s32.totalorder %s23, 1
      %p83 = por %p81, %p82
      %p84 = scmp.ne.s32.totalorder %s75, %s76
      %p85 = scmp.eq.s32.totalorder %s23, 0
      %p86 = por %p84, %p85
      %p87 = scmp.ne.s32.totalorder %s75, %s76
      %p88 = scmp.eq.s32.totalorder %s24, 1
      %p89 = por %p87, %p88
      %p91 = scmp.ne.s32.totalorder %s76, %s90
      %p92 = scmp.eq.s32.totalorder %s24, 0
      %p93 = por %p91, %p92
      %s95 = sadd.s32 %s94, 1
      %p98 = scmp.eq.s32.totalorder %s18, 1
      %p99 = scmp.ne.s32.totalorder %s94, %s96
      %p100 = scmp.eq.s32.totalorder %s18, 0
      %p101 = por %p99, %p100
      %p102 = scmp.ne.s32.totalorder %s94, %s96
      %p103 = scmp.eq.s32.totalorder %s23, 1
      %p104 = por %p102, %p103
      %p105 = scmp.ne.s32.totalorder %s96, %s97
      %p106 = scmp.eq.s32.totalorder %s23, 0
      %p107 = por %p105, %p106
      %p108 = scmp.ne.s32.totalorder %s96, %s97
      %p109 = scmp.eq.s32.totalorder %s24, 1
      %p110 = por %p108, %p109
      %p112 = scmp.ne.s32.totalorder %s97, %s111
      %p113 = scmp.eq.s32.totalorder %s24, 0
      %p114 = por %p112, %p113
      %s115 = ssub.s32 %s18, %s25
      %p116 = scmp.eq.s32.totalorder %s115, 0
      %s118 = sadd.s32 %s117, 1
      %s119 = scalar_select %p116, %s117, %s118
      %p122 = pneg %p116
      %p123 = scmp.eq.s32.totalorder %s18, 1
      %p124 = por %p122, %p123
      %p125 = scmp.ne.s32.totalorder %s117, %s120
      %p126 = scmp.eq.s32.totalorder %s18, 0
      %p127 = por %p125, %p126
      %p128 = scmp.ne.s32.totalorder %s117, %s120
      %p129 = scmp.eq.s32.totalorder %s23, 1
      %p130 = por %p128, %p129
      %p131 = scmp.ne.s32.totalorder %s120, %s121
      %p132 = scmp.eq.s32.totalorder %s23, 0
      %p133 = por %p131, %p132
      %p134 = scmp.ne.s32.totalorder %s120, %s121
      %p135 = scmp.eq.s32.totalorder %s24, 1
      %p136 = por %p134, %p135
      %p138 = scmp.ne.s32.totalorder %s121, %s137
      %p139 = scmp.eq.s32.totalorder %s24, 0
      %p140 = por %p138, %p139
      %p141 = scmp.le.s32.totalorder 1, %s18
      %p142 = scmp.lt.s32.totalorder %s18, 3
      %p143 = pnand %p141, %p142
      %p144 = pneg %p143
      // Predicated region
      $region9: #{tpu_custom_call.1} parent=5 // pred_check
        _
      $region10: #{tpu_custom_call.1} parent=5 // pred_check_branch
        %146 = sbr.rel (%p143) target = $region12
      $region11: #{tpu_custom_call.1} parent=5 // pred_region
        %s147 = ssub.s32 %s18, 1
        // Predicated region
        $region13: #{tpu_custom_call.1} parent=11 // pred_check
          %p148 = pneg %p65
        $region14: #{tpu_custom_call.1} parent=11 // pred_check_branch
          %150 = sbr.rel (%p148) target = $region16
        $region15: #{tpu_custom_call.1} parent=11 // pred_region
          %s152 = ssub.s32 1536, 1536
          %153 = vsyncadd [#allocation7], %s152
          %s154 = sshll.u32 [#allocation6], 4
          %s155 = int_to_ptr.vmem [resolvable:$true] %s154
          %160 = dma.hbm_to_vmem [thread:$0]  %s1, 1536, %s155, [#allocation7], 128, 128, 8
        $region16: #{tpu_custom_call.1} parent=11 // pred_fallthru
          _
        // Predicated region
        $region17: #{tpu_custom_call.1} parent=11 // pred_check
          %p161 = pneg %p86
        $region18: #{tpu_custom_call.1} parent=11 // pred_check_branch
          %163 = sbr.rel (%p161) target = $region20
        $region19: #{tpu_custom_call.1} parent=11 // pred_region
          %s165 = ssub.s32 128, 128
          %166 = vsyncadd [#allocation7], %s165
          %s168 = sshll.u32 [#allocation8], 4
          %s169 = int_to_ptr.vmem [resolvable:$true] %s168
          %171 = dma.hbm_to_vmem [thread:$0]  %s2, 128, %s169, [#allocation7]
        $region20: #{tpu_custom_call.1} parent=11 // pred_fallthru
          _
        // Predicated region
        $region21: #{tpu_custom_call.1} parent=11 // pred_check
          %p172 = pneg %p107
        $region22: #{tpu_custom_call.1} parent=11 // pred_check_branch
          %174 = sbr.rel (%p172) target = $region24
        $region23: #{tpu_custom_call.1} parent=11 // pred_region
          %s176 = ssub.s32 2048, 2048
          %177 = vsyncadd [#allocation10], %s176
          %s178 = sshll.u32 [#allocation9], 4
          %s179 = int_to_ptr.vmem [resolvable:$true] %s178
          %184 = dma.hbm_to_vmem [thread:$0]  %s3, 2048, %s179, [#allocation10], 128, 128, 8
        $region24: #{tpu_custom_call.1} parent=11 // pred_fallthru
          _
      $region12: #{tpu_custom_call.1} parent=5 // pred_fallthru
        _
      %p185 = scmp.lt.s32.totalorder %s18, 2
      // Predicated region
      $region25: #{tpu_custom_call.1} parent=5 // pred_check
        %p186 = pneg %p185
      $region26: #{tpu_custom_call.1} parent=5 // pred_check_branch
        %188 = sbr.rel (%p186) target = $region28
      $region27: #{tpu_custom_call.1} parent=5 // pred_region
        // Predicated region
        $region29: #{tpu_custom_call.1} parent=27 // pred_check
          %p189 = pneg %p38
        $region30: #{tpu_custom_call.1} parent=27 // pred_check_branch
          %191 = sbr.rel (%p189) target = $region32
        $region31: #{tpu_custom_call.1} parent=27 // pred_region
          %s192 = sand.u32 %s28, 1
          %s193 = scalar_lea.sflag [#allocation4], %s192
          %s194 = sand.u32 %s28, 1
          %s195 = smul.addr %s194, 16
          %s196 = scalar_lea.vmem [#allocation3], %s195
          %s198 = ssub.s32 256, 256
          %199 = vsyncadd %s193, %s198
          %s200 = smul.addr %s18, 2
          %s201 = smul.addr %s200, 128
          %s202 = scalar_lea.hbm %s0, %s201
          %s203 = sshll.u32 %s196, 4
          %s204 = int_to_ptr.vmem [resolvable:$true] %s203
          %209 = dma.hbm_to_vmem [thread:$0]  %s202, 256, %s204, %s193, 128, 128, 8
        $region32: #{tpu_custom_call.1} parent=27 // pred_fallthru
          _
      $region28: #{tpu_custom_call.1} parent=5 // pred_fallthru
        _
      %p210 = scmp.le.s32.totalorder 1, %s18
      %p211 = scmp.lt.s32.totalorder %s18, 3
      %p212 = pnand %p210, %p211
      %p213 = pneg %p212
      // Predicated region
      $region33: #{tpu_custom_call.1} parent=5 // pred_check
        _
      $region34: #{tpu_custom_call.1} parent=5 // pred_check_branch
        %215 = sbr.rel (%p212) target = $region36
      $region35: #{tpu_custom_call.1} parent=5 // pred_region
        %s216 = ssub.s32 %s18, 1
        %s217 = sand.u32 %s31, 1
        %s218 = scalar_lea.sflag [#allocation4], %s217
        %s219 = sand.u32 %s31, 1
        %s220 = smul.addr %s219, 16
        %s221 = scalar_lea.vmem [#allocation3], %s220
        // Predicated region
        $region37: #{tpu_custom_call.1} parent=35 // pred_check
          %p222 = pneg %p44
        $region38: #{tpu_custom_call.1} parent=35 // pred_check_branch
          %224 = sbr.rel (%p222) target = $region40
        $region39: #{tpu_custom_call.1} parent=35 // pred_region
          %225 = dma.done %s218, 256
        $region40: #{tpu_custom_call.1} parent=35 // pred_fallthru
          _
        // Predicated region
        $region41: #{tpu_custom_call.1} parent=35 // pred_check
          %p226 = pneg %p65
        $region42: #{tpu_custom_call.1} parent=35 // pred_check_branch
          %228 = sbr.rel (%p226) target = $region44
        $region43: #{tpu_custom_call.1} parent=35 // pred_region
          %229 = dma.done [#allocation7], 1536
        $region44: #{tpu_custom_call.1} parent=35 // pred_fallthru
          _
        // Predicated region
        $region45: #{tpu_custom_call.1} parent=35 // pred_check
          %p230 = pneg %p86
        $region46: #{tpu_custom_call.1} parent=35 // pred_check_branch
          %232 = sbr.rel (%p230) target = $region48
        $region47: #{tpu_custom_call.1} parent=35 // pred_region
          %233 = dma.done [#allocation7], 128
        $region48: #{tpu_custom_call.1} parent=35 // pred_fallthru
          _
        // Predicated region
        $region49: #{tpu_custom_call.1} parent=35 // pred_check
          %p234 = pneg %p107
        $region50: #{tpu_custom_call.1} parent=35 // pred_check_branch
          %236 = sbr.rel (%p234) target = $region52
        $region51: #{tpu_custom_call.1} parent=35 // pred_region
          %237 = dma.done [#allocation10], 2048
        $region52: #{tpu_custom_call.1} parent=35 // pred_fallthru
          _
        %s238 = sand.u32 %s31, 1
        %s239 = scalar_lea.sflag [#allocation4], %s238
        %s240 = sand.u32 %s31, 1
        %s241 = smul.addr %s240, 16
        %s242 = scalar_lea.vmem [#allocation3], %s241
        %p243 = pneg %p44
        %p244 = pneg %p41
        %p245 = pneg %p65
        %p246 = pneg %p62
        %p247 = pneg %p86
        %p248 = pneg %p83
        %p249 = pneg %p107
        %p250 = pneg %p104
        %p251 = pneg %p133
        %p252 = pneg %p130
        %s253 = sand.u32 %s120, 1
        %s254 = scalar_lea.sflag [#allocation5], %s253
        %s255 = sand.u32 %s120, 1
        %s256 = smul.addr %s255, 16
        %s257 = scalar_lea.vmem [#allocation11], %s256
        %258 = vst [vmem:[#allocation2] sm:$0xff] 0.0
        %259 = vst [vmem:[#allocation2 + $0x18] sm:$0xff] 0.0
        %260 = vst [vmem:[#allocation2 + $0x20] sm:$0xff] 0.0
        %261 = vst [vmem:[#allocation2 + $0x38] sm:$0xff] 0.0
        %262 = vst [vmem:[#allocation2 + $0x40] sm:$0xff] 0.0
        %263 = vst [vmem:[#allocation2 + $0x58] sm:$0xff] 0.0
        %264 = vst [vmem:[#allocation2 + $0x60] sm:$0xff] 0.0
        %265 = vst [vmem:[#allocation2 + $0x78] sm:$0xff] 0.0
        %v266 = vld [vmem:[%s221] sm:$0xff]
        %v267 = vld [vmem:[%s221 + $0x8] sm:$0xff]
        %268 = vst [vmem:[#allocation2 + $0x8] sm:$0xff] %v266
        %269 = vst [vmem:[#allocation2 + $0x10] sm:$0xff] %v267
        %v270 = vld [vmem:[#allocation8] sm:$0x1]
        %v271 = vlaneseq
        %v272 = vshrl.u32 %v271, 7
        %v273 = vsub.s32 0, %v272
        %v274 = vrot.slane %v270, %v273
        %v275 = vld [vmem:[#allocation2 + $0x6] sm:$0xff]
        %v276 = vld [vmem:[#allocation2 + $0xe] sm:$0xff]
        %277 = vrot.lane.b32.xlu0 %v275, 16
        %v278 = vpop.permute.xlu0 %277
        %279 = vrot.lane.b32.xlu0 %v276, 16
        %v280 = vpop.permute.xlu0 %279
        %v281 = vld [vmem:[#allocation6] sm:$0x1]
        %v282 = vlaneseq
        %v283 = vshrl.u32 %v282, 7
        %v284 = vsub.s32 0, %v283
        %v285 = vrot.slane %v281, %v284
        %v286 = vmul.f32 %v278, %v285
        %v287 = vmul.f32 %v280, %v285
        %v288 = vadd.f32 %v274, %v286
        %v289 = vadd.f32 %v274, %v287
        %290 = vrot.lane.b32.xlu0 %v275, 8
        %v291 = vpop.permute.xlu0 %290
        %292 = vrot.lane.b32.xlu0 %v276, 8
        %v293 = vpop.permute.xlu0 %292
        %v294 = vld [vmem:[#allocation6 + $0x1] sm:$0x1]
        %v295 = vlaneseq
        %v296 = vshrl.u32 %v295, 7
        %v297 = vsub.s32 0, %v296
        %v298 = vrot.slane %v294, %v297
        %v299 = vmul.f32 %v291, %v298
        %v300 = vmul.f32 %v293, %v298
        %v301 = vadd.f32 %v299, 0.0
        %v302 = vadd.f32 %v300, 0.0
        %v303 = vld [vmem:[#allocation6 + $0x2] sm:$0x1]
        %v304 = vlaneseq
        %v305 = vshrl.u32 %v304, 7
        %v306 = vsub.s32 0, %v305
        %v307 = vrot.slane %v303, %v306
        %v308 = vmul.f32 %v275, %v307
        %v309 = vmul.f32 %v276, %v307
        %v310 = vadd.f32 %v288, %v308
        %v311 = vadd.f32 %v289, %v309
        %312 = vrot.lane.b32.xlu0 %v275, 120
        %v313 = vpop.permute.xlu0 %312
        %314 = vrot.lane.b32.xlu0 %v276, 120
        %v315 = vpop.permute.xlu0 %314
        %v316 = vld [vmem:[#allocation6 + $0x3] sm:$0x1]
        %v317 = vlaneseq
        %v318 = vshrl.u32 %v317, 7
        %v319 = vsub.s32 0, %v318
        %v320 = vrot.slane %v316, %v319
        %v321 = vmul.f32 %v313, %v320
        %v322 = vmul.f32 %v315, %v320
        %v323 = vadd.f32 %v301, %v321
        %v324 = vadd.f32 %v302, %v322
        %325 = vrot.lane.b32.xlu0 %v275, 112
        %v326 = vpop.permute.xlu0 %325
        %327 = vrot.lane.b32.xlu0 %v276, 112
        %v328 = vpop.permute.xlu0 %327
        %v329 = vld [vmem:[#allocation6 + $0x4] sm:$0x1]
        %v330 = vlaneseq
        %v331 = vshrl.u32 %v330, 7
        %v332 = vsub.s32 0, %v331
        %v333 = vrot.slane %v329, %v332
        %v334 = vmul.f32 %v326, %v333
        %v335 = vmul.f32 %v328, %v333
        %v336 = vadd.f32 %v310, %v334
        %v337 = vadd.f32 %v311, %v335
        %v338 = vld [vmem:[#allocation2 + $0x7] sm:$0xff]
        %v339 = vld [vmem:[#allocation2 + $0xf] sm:$0xff]
        %340 = vrot.lane.b32.xlu0 %v338, 16
        %v341 = vpop.permute.xlu0 %340
        %342 = vrot.lane.b32.xlu0 %v339, 16
        %v343 = vpop.permute.xlu0 %342
        %v344 = vld [vmem:[#allocation6 + $0x5] sm:$0x1]
        %v345 = vlaneseq
        %v346 = vshrl.u32 %v345, 7
        %v347 = vsub.s32 0, %v346
        %v348 = vrot.slane %v344, %v347
        %v349 = vmul.f32 %v341, %v348
        %v350 = vmul.f32 %v343, %v348
        %v351 = vadd.f32 %v323, %v349
        %v352 = vadd.f32 %v324, %v350
        %353 = vrot.lane.b32.xlu0 %v338, 8
        %v354 = vpop.permute.xlu0 %353
        %355 = vrot.lane.b32.xlu0 %v339, 8
        %v356 = vpop.permute.xlu0 %355
        %v357 = vld [vmem:[#allocation6 + $0x6] sm:$0x1]
        %v358 = vlaneseq
        %v359 = vshrl.u32 %v358, 7
        %v360 = vsub.s32 0, %v359
        %v361 = vrot.slane %v357, %v360
        %v362 = vmul.f32 %v354, %v361
        %v363 = vmul.f32 %v356, %v361
        %v364 = vadd.f32 %v336, %v362
        %v365 = vadd.f32 %v337, %v363
        %v366 = vld [vmem:[#allocation6 + $0x7] sm:$0x1]
        %v367 = vlaneseq
        %v368 = vshrl.u32 %v367, 7
        %v369 = vsub.s32 0, %v368
        %v370 = vrot.slane %v366, %v369
        %v371 = vmul.f32 %v338, %v370
        %v372 = vmul.f32 %v339, %v370
        %v373 = vadd.f32 %v351, %v371
        %v374 = vadd.f32 %v352, %v372
        %375 = vrot.lane.b32.xlu0 %v338, 120
        %v376 = vpop.permute.xlu0 %375
        %377 = vrot.lane.b32.xlu0 %v339, 120
        %v378 = vpop.permute.xlu0 %377
        %v379 = vld [vmem:[#allocation6 + $0x8] sm:$0x1]
        %v380 = vlaneseq
        %v381 = vshrl.u32 %v380, 7
        %v382 = vsub.s32 0, %v381
        %v383 = vrot.slane %v379, %v382
        %v384 = vmul.f32 %v376, %v383
        %v385 = vmul.f32 %v378, %v383
        %v386 = vadd.f32 %v364, %v384
        %v387 = vadd.f32 %v365, %v385
        %388 = vrot.lane.b32.xlu0 %v338, 112
        %v389 = vpop.permute.xlu0 %388
        %390 = vrot.lane.b32.xlu0 %v339, 112
        %v391 = vpop.permute.xlu0 %390
        %v392 = vld [vmem:[#allocation6 + $0x9] sm:$0x1]
        %v393 = vlaneseq
        %v394 = vshrl.u32 %v393, 7
        %v395 = vsub.s32 0, %v394
        %v396 = vrot.slane %v392, %v395
        %v397 = vmul.f32 %v389, %v396
        %v398 = vmul.f32 %v391, %v396
        %v399 = vadd.f32 %v373, %v397
        %v400 = vadd.f32 %v374, %v398
        %v401 = vld [vmem:[#allocation2 + $0x8] sm:$0xff]
        %v402 = vld [vmem:[#allocation2 + $0x10] sm:$0xff]
        %403 = vrot.lane.b32.xlu0 %v401, 16
        %v404 = vpop.permute.xlu0 %403
        %405 = vrot.lane.b32.xlu0 %v402, 16
        %v406 = vpop.permute.xlu0 %405
        %v407 = vld [vmem:[#allocation6 + $0xa] sm:$0x1]
        %v408 = vlaneseq
        %v409 = vshrl.u32 %v408, 7
        %v410 = vsub.s32 0, %v409
        %v411 = vrot.slane %v407, %v410
        %v412 = vmul.f32 %v404, %v411
        %v413 = vmul.f32 %v406, %v411
        %v414 = vadd.f32 %v386, %v412
        %v415 = vadd.f32 %v387, %v413
        %416 = vrot.lane.b32.xlu0 %v401, 8
        %v417 = vpop.permute.xlu0 %416
        %418 = vrot.lane.b32.xlu0 %v402, 8
        %v419 = vpop.permute.xlu0 %418
        %v420 = vld [vmem:[#allocation6 + $0xb] sm:$0x1]
        %v421 = vlaneseq
        %v422 = vshrl.u32 %v421, 7
        %v423 = vsub.s32 0, %v422
        %v424 = vrot.slane %v420, %v423
        %v425 = vmul.f32 %v417, %v424
        %v426 = vmul.f32 %v419, %v424
        %v427 = vadd.f32 %v399, %v425
        %v428 = vadd.f32 %v400, %v426
        %v429 = vld [vmem:[#allocation6 + $0xc] sm:$0x1]
        %v430 = vlaneseq
        %v431 = vshrl.u32 %v430, 7
        %v432 = vsub.s32 0, %v431
        %v433 = vrot.slane %v429, %v432
        %v434 = vmul.f32 %v401, %v433
        %v435 = vmul.f32 %v402, %v433
        %v436 = vadd.f32 %v414, %v434
        %v437 = vadd.f32 %v415, %v435
        %438 = vrot.lane.b32.xlu0 %v401, 120
        %v439 = vpop.permute.xlu0 %438
        %440 = vrot.lane.b32.xlu0 %v402, 120
        %v441 = vpop.permute.xlu0 %440
        %v442 = vld [vmem:[#allocation6 + $0xd] sm:$0x1]
        %v443 = vlaneseq
        %v444 = vshrl.u32 %v443, 7
        %v445 = vsub.s32 0, %v444
        %v446 = vrot.slane %v442, %v445
        %v447 = vmul.f32 %v439, %v446
        %v448 = vmul.f32 %v441, %v446
        %v449 = vadd.f32 %v427, %v447
        %v450 = vadd.f32 %v428, %v448
        %451 = vrot.lane.b32.xlu0 %v401, 112
        %v452 = vpop.permute.xlu0 %451
        %453 = vrot.lane.b32.xlu0 %v402, 112
        %v454 = vpop.permute.xlu0 %453
        %v455 = vld [vmem:[#allocation6 + $0xe] sm:$0x1]
        %v456 = vlaneseq
        %v457 = vshrl.u32 %v456, 7
        %v458 = vsub.s32 0, %v457
        %v459 = vrot.slane %v455, %v458
        %v460 = vmul.f32 %v452, %v459
        %v461 = vmul.f32 %v454, %v459
        %v462 = vadd.f32 %v436, %v460
        %v463 = vadd.f32 %v437, %v461
        %v464 = vld [vmem:[#allocation2 + $0x9] sm:$0xff]
        %v465 = vld [vmem:[#allocation2 + $0x11] sm:$0xff]
        %466 = vrot.lane.b32.xlu0 %v464, 16
        %v467 = vpop.permute.xlu0 %466
        %468 = vrot.lane.b32.xlu0 %v465, 16
        %v469 = vpop.permute.xlu0 %468
        %v470 = vld [vmem:[#allocation6 + $0xf] sm:$0x1]
        %v471 = vlaneseq
        %v472 = vshrl.u32 %v471, 7
        %v473 = vsub.s32 0, %v472
        %v474 = vrot.slane %v470, %v473
        %v475 = vmul.f32 %v467, %v474
        %v476 = vmul.f32 %v469, %v474
        %v477 = vadd.f32 %v449, %v475
        %v478 = vadd.f32 %v450, %v476
        %479 = vrot.lane.b32.xlu0 %v464, 8
        %v480 = vpop.permute.xlu0 %479
        %481 = vrot.lane.b32.xlu0 %v465, 8
        %v482 = vpop.permute.xlu0 %481
        %v483 = vld [vmem:[#allocation6 + $0x10] sm:$0x1]
        %v484 = vlaneseq
        %v485 = vshrl.u32 %v484, 7
        %v486 = vsub.s32 0, %v485
        %v487 = vrot.slane %v483, %v486
        %v488 = vmul.f32 %v480, %v487
        %v489 = vmul.f32 %v482, %v487
        %v490 = vadd.f32 %v462, %v488
        %v491 = vadd.f32 %v463, %v489
        %v492 = vld [vmem:[#allocation6 + $0x11] sm:$0x1]
        %v493 = vlaneseq
        %v494 = vshrl.u32 %v493, 7
        %v495 = vsub.s32 0, %v494
        %v496 = vrot.slane %v492, %v495
        %v497 = vmul.f32 %v464, %v496
        %v498 = vmul.f32 %v465, %v496
        %v499 = vadd.f32 %v477, %v497
        %v500 = vadd.f32 %v478, %v498
        %501 = vrot.lane.b32.xlu0 %v464, 120
        %v502 = vpop.permute.xlu0 %501
        %503 = vrot.lane.b32.xlu0 %v465, 120
        %v504 = vpop.permute.xlu0 %503
        %v505 = vld [vmem:[#allocation6 + $0x12] sm:$0x1]
        %v506 = vlaneseq
        %v507 = vshrl.u32 %v506, 7
        %v508 = vsub.s32 0, %v507
        %v509 = vrot.slane %v505, %v508
        %v510 = vmul.f32 %v502, %v509
        %v511 = vmul.f32 %v504, %v509
        %v512 = vadd.f32 %v490, %v510
        %v513 = vadd.f32 %v491, %v511
        %514 = vrot.lane.b32.xlu0 %v464, 112
        %v515 = vpop.permute.xlu0 %514
        %516 = vrot.lane.b32.xlu0 %v465, 112
        %v517 = vpop.permute.xlu0 %516
        %v518 = vld [vmem:[#allocation6 + $0x13] sm:$0x1]
        %v519 = vlaneseq
        %v520 = vshrl.u32 %v519, 7
        %v521 = vsub.s32 0, %v520
        %v522 = vrot.slane %v518, %v521
        %v523 = vmul.f32 %v515, %v522
        %v524 = vmul.f32 %v517, %v522
        %v525 = vadd.f32 %v499, %v523
        %v526 = vadd.f32 %v500, %v524
        %v527 = vld [vmem:[#allocation2 + $0xa] sm:$0xff]
        %v528 = vld [vmem:[#allocation2 + $0x12] sm:$0xff]
        %529 = vrot.lane.b32.xlu0 %v527, 16
        %v530 = vpop.permute.xlu0 %529
        %531 = vrot.lane.b32.xlu0 %v528, 16
        %v532 = vpop.permute.xlu0 %531
        %v533 = vld [vmem:[#allocation6 + $0x14] sm:$0x1]
        %v534 = vlaneseq
        %v535 = vshrl.u32 %v534, 7
        %v536 = vsub.s32 0, %v535
        %v537 = vrot.slane %v533, %v536
        %v538 = vmul.f32 %v530, %v537
        %v539 = vmul.f32 %v532, %v537
        %v540 = vadd.f32 %v512, %v538
        %v541 = vadd.f32 %v513, %v539
        %542 = vrot.lane.b32.xlu0 %v527, 8
        %v543 = vpop.permute.xlu0 %542
        %544 = vrot.lane.b32.xlu0 %v528, 8
        %v545 = vpop.permute.xlu0 %544
        %v546 = vld [vmem:[#allocation6 + $0x15] sm:$0x1]
        %v547 = vlaneseq
        %v548 = vshrl.u32 %v547, 7
        %v549 = vsub.s32 0, %v548
        %v550 = vrot.slane %v546, %v549
        %v551 = vmul.f32 %v543, %v550
        %v552 = vmul.f32 %v545, %v550
        %v553 = vadd.f32 %v525, %v551
        %v554 = vadd.f32 %v526, %v552
        %v555 = vld [vmem:[#allocation6 + $0x16] sm:$0x1]
        %v556 = vlaneseq
        %v557 = vshrl.u32 %v556, 7
        %v558 = vsub.s32 0, %v557
        %v559 = vrot.slane %v555, %v558
        %v560 = vmul.f32 %v527, %v559
        %v561 = vmul.f32 %v528, %v559
        %v562 = vadd.f32 %v540, %v560
        %v563 = vadd.f32 %v541, %v561
        %564 = vrot.lane.b32.xlu0 %v527, 120
        %v565 = vpop.permute.xlu0 %564
        %566 = vrot.lane.b32.xlu0 %v528, 120
        %v567 = vpop.permute.xlu0 %566
        %v568 = vld [vmem:[#allocation6 + $0x17] sm:$0x1]
        %v569 = vlaneseq
        %v570 = vshrl.u32 %v569, 7
        %v571 = vsub.s32 0, %v570
        %v572 = vrot.slane %v568, %v571
        %v573 = vmul.f32 %v565, %v572
        %v574 = vmul.f32 %v567, %v572
        %v575 = vadd.f32 %v553, %v573
        %v576 = vadd.f32 %v554, %v574
        %577 = vrot.lane.b32.xlu0 %v527, 112
        %v578 = vpop.permute.xlu0 %577
        %579 = vrot.lane.b32.xlu0 %v528, 112
        %v580 = vpop.permute.xlu0 %579
        %v581 = vld [vmem:[#allocation6 + $0x18] sm:$0x1]
        %v582 = vlaneseq
        %v583 = vshrl.u32 %v582, 7
        %v584 = vsub.s32 0, %v583
        %v585 = vrot.slane %v581, %v584
        %v586 = vmul.f32 %v578, %v585
        %v587 = vmul.f32 %v580, %v585
        %v588 = vadd.f32 %v562, %v586
        %v589 = vadd.f32 %v563, %v587
        %v590 = vadd.f32 %v588, %v575
        %v591 = vadd.f32 %v589, %v576
        %v592 = vld [vmem:[#allocation8 + $0x1] sm:$0x1]
        %v593 = vlaneseq
        %v594 = vshrl.u32 %v593, 7
        %v595 = vsub.s32 0, %v594
        %v596 = vrot.slane %v592, %v595
        %v597 = vld [vmem:[#allocation8 + $0x2] sm:$0x1]
        %v598 = vlaneseq
        %v599 = vshrl.u32 %v598, 7
        %v600 = vsub.s32 0, %v599
        %v601 = vrot.slane %v597, %v600
        %v602 = vld [vmem:[#allocation8 + $0x3] sm:$0x1]
        %v603 = vlaneseq
        %v604 = vshrl.u32 %v603, 7
        %v605 = vsub.s32 0, %v604
        %v606 = vrot.slane %v602, %v605
        %607 = vrot.lane.b32.xlu0 %v590, 56
        %v608 = vpop.permute.xlu0 %607
        %609 = vrot.lane.b32.xlu0 %v591, 56
        %v610 = vpop.permute.xlu0 %609
        %v611 = vld [vmem:[#allocation6 + $0x2b] sm:$0x1]
        %v612 = vlaneseq
        %v613 = vshrl.u32 %v612, 7
        %v614 = vsub.s32 0, %v613
        %v615 = vrot.slane %v611, %v614
        %v616 = vmul.f32 %v608, %v615
        %v617 = vmul.f32 %v610, %v615
        %v618 = vadd.f32 %v606, %v616
        %v619 = vadd.f32 %v606, %v617
        %620 = vrot.lane.b32.xlu0 %v590, 48
        %v621 = vpop.permute.xlu0 %620
        %622 = vrot.lane.b32.xlu0 %v591, 48
        %v623 = vpop.permute.xlu0 %622
        %v624 = vld [vmem:[#allocation6 + $0x2c] sm:$0x1]
        %v625 = vlaneseq
        %v626 = vshrl.u32 %v625, 7
        %v627 = vsub.s32 0, %v626
        %v628 = vrot.slane %v624, %v627
        %v629 = vmul.f32 %v621, %v628
        %v630 = vmul.f32 %v623, %v628
        %v631 = vadd.f32 %v618, %v629
        %v632 = vadd.f32 %v619, %v630
        %633 = vrot.lane.b32.xlu0 %v590, 40
        %v634 = vpop.permute.xlu0 %633
        %635 = vrot.lane.b32.xlu0 %v591, 40
        %v636 = vpop.permute.xlu0 %635
        %v637 = vld [vmem:[#allocation6 + $0x20] sm:$0x1]
        %v638 = vlaneseq
        %v639 = vshrl.u32 %v638, 7
        %v640 = vsub.s32 0, %v639
        %v641 = vrot.slane %v637, %v640
        %v642 = vmul.f32 %v634, %v641
        %v643 = vmul.f32 %v636, %v641
        %v644 = vadd.f32 %v601, %v642
        %v645 = vadd.f32 %v601, %v643
        %v646 = vld [vmem:[#allocation6 + $0x2d] sm:$0x1]
        %v647 = vlaneseq
        %v648 = vshrl.u32 %v647, 7
        %v649 = vsub.s32 0, %v648
        %v650 = vrot.slane %v646, %v649
        %v651 = vmul.f32 %v634, %v650
        %v652 = vmul.f32 %v636, %v650
        %v653 = vadd.f32 %v631, %v651
        %v654 = vadd.f32 %v632, %v652
        %655 = vrot.lane.b32.xlu0 %v590, 32
        %v656 = vpop.permute.xlu0 %655
        %657 = vrot.lane.b32.xlu0 %v591, 32
        %v658 = vpop.permute.xlu0 %657
        %v659 = vld [vmem:[#allocation6 + $0x21] sm:$0x1]
        %v660 = vlaneseq
        %v661 = vshrl.u32 %v660, 7
        %v662 = vsub.s32 0, %v661
        %v663 = vrot.slane %v659, %v662
        %v664 = vmul.f32 %v656, %v663
        %v665 = vmul.f32 %v658, %v663
        %v666 = vadd.f32 %v644, %v664
        %v667 = vadd.f32 %v645, %v665
        %v668 = vld [vmem:[#allocation6 + $0x2e] sm:$0x1]
        %v669 = vlaneseq
        %v670 = vshrl.u32 %v669, 7
        %v671 = vsub.s32 0, %v670
        %v672 = vrot.slane %v668, %v671
        %v673 = vmul.f32 %v656, %v672
        %v674 = vmul.f32 %v658, %v672
        %v675 = vadd.f32 %v653, %v673
        %v676 = vadd.f32 %v654, %v674
        %677 = vrot.lane.b32.xlu0 %v590, 24
        %v678 = vpop.permute.xlu0 %677
        %679 = vrot.lane.b32.xlu0 %v591, 24
        %v680 = vpop.permute.xlu0 %679
        %v681 = vld [vmem:[#allocation6 + $0x19] sm:$0x1]
        %v682 = vlaneseq
        %v683 = vshrl.u32 %v682, 7
        %v684 = vsub.s32 0, %v683
        %v685 = vrot.slane %v681, %v684
        %v686 = vmul.f32 %v678, %v685
        %v687 = vmul.f32 %v680, %v685
        %v688 = vadd.f32 %v596, %v686
        %v689 = vadd.f32 %v596, %v687
        %v690 = vld [vmem:[#allocation6 + $0x22] sm:$0x1]
        %v691 = vlaneseq
        %v692 = vshrl.u32 %v691, 7
        %v693 = vsub.s32 0, %v692
        %v694 = vrot.slane %v690, %v693
        %v695 = vmul.f32 %v678, %v694
        %v696 = vmul.f32 %v680, %v694
        %v697 = vadd.f32 %v666, %v695
        %v698 = vadd.f32 %v667, %v696
        %v699 = vld [vmem:[#allocation6 + $0x2f] sm:$0x1]
        %v700 = vlaneseq
        %v701 = vshrl.u32 %v700, 7
        %v702 = vsub.s32 0, %v701
        %v703 = vrot.slane %v699, %v702
        %v704 = vmul.f32 %v678, %v703
        %v705 = vmul.f32 %v680, %v703
        %v706 = vadd.f32 %v675, %v704
        %v707 = vadd.f32 %v676, %v705
        %708 = vrot.lane.b32.xlu0 %v590, 16
        %v709 = vpop.permute.xlu0 %708
        %710 = vrot.lane.b32.xlu0 %v591, 16
        %v711 = vpop.permute.xlu0 %710
        %v712 = vld [vmem:[#allocation6 + $0x1a] sm:$0x1]
        %v713 = vlaneseq
        %v714 = vshrl.u32 %v713, 7
        %v715 = vsub.s32 0, %v714
        %v716 = vrot.slane %v712, %v715
        %v717 = vmul.f32 %v709, %v716
        %v718 = vmul.f32 %v711, %v716
        %v719 = vadd.f32 %v688, %v717
        %v720 = vadd.f32 %v689, %v718
        %v721 = vld [vmem:[#allocation6 + $0x23] sm:$0x1]
        %v722 = vlaneseq
        %v723 = vshrl.u32 %v722, 7
        %v724 = vsub.s32 0, %v723
        %v725 = vrot.slane %v721, %v724
        %v726 = vmul.f32 %v709, %v725
        %v727 = vmul.f32 %v711, %v725
        %v728 = vadd.f32 %v697, %v726
        %v729 = vadd.f32 %v698, %v727
        %v730 = vld [vmem:[#allocation6 + $0x30] sm:$0x1]
        %v731 = vlaneseq
        %v732 = vshrl.u32 %v731, 7
        %v733 = vsub.s32 0, %v732
        %v734 = vrot.slane %v730, %v733
        %v735 = vmul.f32 %v709, %v734
        %v736 = vmul.f32 %v711, %v734
        %v737 = vadd.f32 %v706, %v735
        %v738 = vadd.f32 %v707, %v736
        %739 = vrot.lane.b32.xlu0 %v590, 8
        %v740 = vpop.permute.xlu0 %739
        %741 = vrot.lane.b32.xlu0 %v591, 8
        %v742 = vpop.permute.xlu0 %741
        %v743 = vld [vmem:[#allocation6 + $0x1b] sm:$0x1]
        %v744 = vlaneseq
        %v745 = vshrl.u32 %v744, 7
        %v746 = vsub.s32 0, %v745
        %v747 = vrot.slane %v743, %v746
        %v748 = vmul.f32 %v740, %v747
        %v749 = vmul.f32 %v742, %v747
        %v750 = vadd.f32 %v719, %v748
        %v751 = vadd.f32 %v720, %v749
        %v752 = vld [vmem:[#allocation6 + $0x24] sm:$0x1]
        %v753 = vlaneseq
        %v754 = vshrl.u32 %v753, 7
        %v755 = vsub.s32 0, %v754
        %v756 = vrot.slane %v752, %v755
        %v757 = vmul.f32 %v740, %v756
        %v758 = vmul.f32 %v742, %v756
        %v759 = vadd.f32 %v728, %v757
        %v760 = vadd.f32 %v729, %v758
        %v761 = vld [vmem:[#allocation6 + $0x31] sm:$0x1]
        %v762 = vlaneseq
        %v763 = vshrl.u32 %v762, 7
        %v764 = vsub.s32 0, %v763
        %v765 = vrot.slane %v761, %v764
        %v766 = vmul.f32 %v740, %v765
        %v767 = vmul.f32 %v742, %v765
        %v768 = vadd.f32 %v737, %v766
        %v769 = vadd.f32 %v738, %v767
        %v770 = vld [vmem:[#allocation6 + $0x1c] sm:$0x1]
        %v771 = vlaneseq
        %v772 = vshrl.u32 %v771, 7
        %v773 = vsub.s32 0, %v772
        %v774 = vrot.slane %v770, %v773
        %v775 = vmul.f32 %v590, %v774
        %v776 = vmul.f32 %v591, %v774
        %v777 = vadd.f32 %v750, %v775
        %v778 = vadd.f32 %v751, %v776
        %v779 = vld [vmem:[#allocation6 + $0x25] sm:$0x1]
        %v780 = vlaneseq
        %v781 = vshrl.u32 %v780, 7
        %v782 = vsub.s32 0, %v781
        %v783 = vrot.slane %v779, %v782
        %v784 = vmul.f32 %v590, %v783
        %v785 = vmul.f32 %v591, %v783
        %v786 = vadd.f32 %v759, %v784
        %v787 = vadd.f32 %v760, %v785
        %v788 = vld [vmem:[#allocation6 + $0x32] sm:$0x1]
        %v789 = vlaneseq
        %v790 = vshrl.u32 %v789, 7
        %v791 = vsub.s32 0, %v790
        %v792 = vrot.slane %v788, %v791
        %v793 = vmul.f32 %v590, %v792
        %v794 = vmul.f32 %v591, %v792
        %v795 = vadd.f32 %v768, %v793
        %v796 = vadd.f32 %v769, %v794
        %797 = vrot.lane.b32.xlu0 %v590, 120
        %v798 = vpop.permute.xlu0 %797
        %799 = vrot.lane.b32.xlu0 %v591, 120
        %v800 = vpop.permute.xlu0 %799
        %v801 = vld [vmem:[#allocation6 + $0x1d] sm:$0x1]
        %v802 = vlaneseq
        %v803 = vshrl.u32 %v802, 7
        %v804 = vsub.s32 0, %v803
        %v805 = vrot.slane %v801, %v804
        %v806 = vmul.f32 %v798, %v805
        %v807 = vmul.f32 %v800, %v805
        %v808 = vadd.f32 %v777, %v806
        %v809 = vadd.f32 %v778, %v807
        %v810 = vld [vmem:[#allocation6 + $0x26] sm:$0x1]
        %v811 = vlaneseq
        %v812 = vshrl.u32 %v811, 7
        %v813 = vsub.s32 0, %v812
        %v814 = vrot.slane %v810, %v813
        %v815 = vmul.f32 %v798, %v814
        %v816 = vmul.f32 %v800, %v814
        %v817 = vadd.f32 %v786, %v815
        %v818 = vadd.f32 %v787, %v816
        %v819 = vld [vmem:[#allocation6 + $0x33] sm:$0x1]
        %v820 = vlaneseq
        %v821 = vshrl.u32 %v820, 7
        %v822 = vsub.s32 0, %v821
        %v823 = vrot.slane %v819, %v822
        %v824 = vmul.f32 %v798, %v823
        %v825 = vmul.f32 %v800, %v823
        %v826 = vadd.f32 %v795, %v824
        %v827 = vadd.f32 %v796, %v825
        %828 = vrot.lane.b32.xlu0 %v590, 112
        %v829 = vpop.permute.xlu0 %828
        %830 = vrot.lane.b32.xlu0 %v591, 112
        %v831 = vpop.permute.xlu0 %830
        %v832 = vld [vmem:[#allocation6 + $0x1e] sm:$0x1]
        %v833 = vlaneseq
        %v834 = vshrl.u32 %v833, 7
        %v835 = vsub.s32 0, %v834
        %v836 = vrot.slane %v832, %v835
        %v837 = vmul.f32 %v829, %v836
        %v838 = vmul.f32 %v831, %v836
        %v839 = vadd.f32 %v808, %v837
        %v840 = vadd.f32 %v809, %v838
        %v841 = vld [vmem:[#allocation6 + $0x27] sm:$0x1]
        %v842 = vlaneseq
        %v843 = vshrl.u32 %v842, 7
        %v844 = vsub.s32 0, %v843
        %v845 = vrot.slane %v841, %v844
        %v846 = vmul.f32 %v829, %v845
        %v847 = vmul.f32 %v831, %v845
        %v848 = vadd.f32 %v817, %v846
        %v849 = vadd.f32 %v818, %v847
        %v850 = vld [vmem:[#allocation6 + $0x34] sm:$0x1]
        %v851 = vlaneseq
        %v852 = vshrl.u32 %v851, 7
        %v853 = vsub.s32 0, %v852
        %v854 = vrot.slane %v850, %v853
        %v855 = vmul.f32 %v829, %v854
        %v856 = vmul.f32 %v831, %v854
        %v857 = vadd.f32 %v826, %v855
        %v858 = vadd.f32 %v827, %v856
        %859 = vrot.lane.b32.xlu0 %v590, 104
        %v860 = vpop.permute.xlu0 %859
        %861 = vrot.lane.b32.xlu0 %v591, 104
        %v862 = vpop.permute.xlu0 %861
        %v863 = vld [vmem:[#allocation6 + $0x1f] sm:$0x1]
        %v864 = vlaneseq
        %v865 = vshrl.u32 %v864, 7
        %v866 = vsub.s32 0, %v865
        %v867 = vrot.slane %v863, %v866
        %v868 = vmul.f32 %v860, %v867
        %v869 = vmul.f32 %v862, %v867
        %v870 = vadd.f32 %v839, %v868
        %v871 = vadd.f32 %v840, %v869
        %v872 = vld [vmem:[#allocation6 + $0x28] sm:$0x1]
        %v873 = vlaneseq
        %v874 = vshrl.u32 %v873, 7
        %v875 = vsub.s32 0, %v874
        %v876 = vrot.slane %v872, %v875
        %v877 = vmul.f32 %v860, %v876
        %v878 = vmul.f32 %v862, %v876
        %v879 = vadd.f32 %v848, %v877
        %v880 = vadd.f32 %v849, %v878
        %v881 = vld [vmem:[#allocation6 + $0x35] sm:$0x1]
        %v882 = vlaneseq
        %v883 = vshrl.u32 %v882, 7
        %v884 = vsub.s32 0, %v883
        %v885 = vrot.slane %v881, %v884
        %v886 = vmul.f32 %v860, %v885
        %v887 = vmul.f32 %v862, %v885
        %v888 = vadd.f32 %v857, %v886
        %v889 = vadd.f32 %v858, %v887
        %890 = vrot.lane.b32.xlu0 %v590, 96
        %v891 = vpop.permute.xlu0 %890
        %892 = vrot.lane.b32.xlu0 %v591, 96
        %v893 = vpop.permute.xlu0 %892
        %v894 = vld [vmem:[#allocation6 + $0x29] sm:$0x1]
        %v895 = vlaneseq
        %v896 = vshrl.u32 %v895, 7
        %v897 = vsub.s32 0, %v896
        %v898 = vrot.slane %v894, %v897
        %v899 = vmul.f32 %v891, %v898
        %v900 = vmul.f32 %v893, %v898
        %v901 = vadd.f32 %v879, %v899
        %v902 = vadd.f32 %v880, %v900
        %v903 = vld [vmem:[#allocation6 + $0x36] sm:$0x1]
        %v904 = vlaneseq
        %v905 = vshrl.u32 %v904, 7
        %v906 = vsub.s32 0, %v905
        %v907 = vrot.slane %v903, %v906
        %v908 = vmul.f32 %v891, %v907
        %v909 = vmul.f32 %v893, %v907
        %v910 = vadd.f32 %v888, %v908
        %v911 = vadd.f32 %v889, %v909
        %912 = vrot.lane.b32.xlu0 %v590, 88
        %v913 = vpop.permute.xlu0 %912
        %914 = vrot.lane.b32.xlu0 %v591, 88
        %v915 = vpop.permute.xlu0 %914
        %v916 = vld [vmem:[#allocation6 + $0x2a] sm:$0x1]
        %v917 = vlaneseq
        %v918 = vshrl.u32 %v917, 7
        %v919 = vsub.s32 0, %v918
        %v920 = vrot.slane %v916, %v919
        %v921 = vmul.f32 %v913, %v920
        %v922 = vmul.f32 %v915, %v920
        %v923 = vadd.f32 %v901, %v921
        %v924 = vadd.f32 %v902, %v922
        %v925 = vld [vmem:[#allocation6 + $0x37] sm:$0x1]
        %v926 = vlaneseq
        %v927 = vshrl.u32 %v926, 7
        %v928 = vsub.s32 0, %v927
        %v929 = vrot.slane %v925, %v928
        %v930 = vmul.f32 %v913, %v929
        %v931 = vmul.f32 %v915, %v929
        %v932 = vadd.f32 %v910, %v930
        %v933 = vadd.f32 %v911, %v931
        %934 = vrot.lane.b32.xlu0 %v590, 80
        %v935 = vpop.permute.xlu0 %934
        %936 = vrot.lane.b32.xlu0 %v591, 80
        %v937 = vpop.permute.xlu0 %936
        %v938 = vld [vmem:[#allocation6 + $0x38] sm:$0x1]
        %v939 = vlaneseq
        %v940 = vshrl.u32 %v939, 7
        %v941 = vsub.s32 0, %v940
        %v942 = vrot.slane %v938, %v941
        %v943 = vmul.f32 %v935, %v942
        %v944 = vmul.f32 %v937, %v942
        %v945 = vadd.f32 %v932, %v943
        %v946 = vadd.f32 %v933, %v944
        %947 = vrot.lane.b32.xlu0 %v590, 72
        %v948 = vpop.permute.xlu0 %947
        %949 = vrot.lane.b32.xlu0 %v591, 72
        %v950 = vpop.permute.xlu0 %949
        %v951 = vld [vmem:[#allocation6 + $0x39] sm:$0x1]
        %v952 = vlaneseq
        %v953 = vshrl.u32 %v952, 7
        %v954 = vsub.s32 0, %v953
        %v955 = vrot.slane %v951, %v954
        %v956 = vmul.f32 %v948, %v955
        %v957 = vmul.f32 %v950, %v955
        %v958 = vadd.f32 %v945, %v956
        %v959 = vadd.f32 %v946, %v957
        %960 = vst [vmem:[#allocation2 + $0x28] sm:$0xff] %v870
        %961 = vst [vmem:[#allocation2 + $0x30] sm:$0xff] %v871
        %962 = vst [vmem:[#allocation2 + $0x48] sm:$0xff] %v923
        %963 = vst [vmem:[#allocation2 + $0x50] sm:$0xff] %v924
        %964 = vst [vmem:[#allocation2 + $0x68] sm:$0xff] %v958
        %965 = vst [vmem:[#allocation2 + $0x70] sm:$0xff] %v959
        %v966 = vld [vmem:[#allocation2 + $0x25] sm:$0xff]
        %v967 = vld [vmem:[#allocation2 + $0x2d] sm:$0xff]
        %v968 = vld [vmem:[#allocation6 + $0x3a] sm:$0x1]
        %v969 = vlaneseq
        %v970 = vshrl.u32 %v969, 7
        %v971 = vsub.s32 0, %v970
        %v972 = vrot.slane %v968, %v971
        %v973 = vmul.f32 %v966, %v972
        %v974 = vmul.f32 %v967, %v972
        %v975 = vadd.f32 %v973, 0.0
        %v976 = vadd.f32 %v974, 0.0
        %v977 = vld [vmem:[#allocation2 + $0x26] sm:$0xff]
        %v978 = vld [vmem:[#allocation2 + $0x2e] sm:$0xff]
        %v979 = vld [vmem:[#allocation6 + $0x3b] sm:$0x1]
        %v980 = vlaneseq
        %v981 = vshrl.u32 %v980, 7
        %v982 = vsub.s32 0, %v981
        %v983 = vrot.slane %v979, %v982
        %v984 = vmul.f32 %v977, %v983
        %v985 = vmul.f32 %v978, %v983
        %v986 = vadd.f32 %v975, %v984
        %v987 = vadd.f32 %v976, %v985
        %v988 = vld [vmem:[#allocation2 + $0x27] sm:$0xff]
        %v989 = vld [vmem:[#allocation2 + $0x2f] sm:$0xff]
        %v990 = vld [vmem:[#allocation6 + $0x3c] sm:$0x1]
        %v991 = vlaneseq
        %v992 = vshrl.u32 %v991, 7
        %v993 = vsub.s32 0, %v992
        %v994 = vrot.slane %v990, %v993
        %v995 = vmul.f32 %v988, %v994
        %v996 = vmul.f32 %v989, %v994
        %v997 = vadd.f32 %v986, %v995
        %v998 = vadd.f32 %v987, %v996
        %v999 = vld [vmem:[#allocation2 + $0x28] sm:$0xff]
        %v1000 = vld [vmem:[#allocation2 + $0x30] sm:$0xff]
        %v1001 = vld [vmem:[#allocation6 + $0x3d] sm:$0x1]
        %v1002 = vlaneseq
        %v1003 = vshrl.u32 %v1002, 7
        %v1004 = vsub.s32 0, %v1003
        %v1005 = vrot.slane %v1001, %v1004
        %v1006 = vmul.f32 %v999, %v1005
        %v1007 = vmul.f32 %v1000, %v1005
        %v1008 = vadd.f32 %v997, %v1006
        %v1009 = vadd.f32 %v998, %v1007
        %v1010 = vld [vmem:[#allocation2 + $0x29] sm:$0xff]
        %v1011 = vld [vmem:[#allocation2 + $0x31] sm:$0xff]
        %v1012 = vld [vmem:[#allocation6 + $0x3e] sm:$0x1]
        %v1013 = vlaneseq
        %v1014 = vshrl.u32 %v1013, 7
        %v1015 = vsub.s32 0, %v1014
        %v1016 = vrot.slane %v1012, %v1015
        %v1017 = vmul.f32 %v1010, %v1016
        %v1018 = vmul.f32 %v1011, %v1016
        %v1019 = vadd.f32 %v1008, %v1017
        %v1020 = vadd.f32 %v1009, %v1018
        %v1021 = vld [vmem:[#allocation2 + $0x2a] sm:$0xff]
        %v1022 = vld [vmem:[#allocation2 + $0x32] sm:$0xff]
        %v1023 = vld [vmem:[#allocation6 + $0x3f] sm:$0x1]
        %v1024 = vlaneseq
        %v1025 = vshrl.u32 %v1024, 7
        %v1026 = vsub.s32 0, %v1025
        %v1027 = vrot.slane %v1023, %v1026
        %v1028 = vmul.f32 %v1021, %v1027
        %v1029 = vmul.f32 %v1022, %v1027
        %v1030 = vadd.f32 %v1019, %v1028
        %v1031 = vadd.f32 %v1020, %v1029
        %v1032 = vld [vmem:[#allocation2 + $0x2b] sm:$0xff]
        %v1033 = vld [vmem:[#allocation2 + $0x33] sm:$0xff]
        %v1034 = vld [vmem:[#allocation6 + $0x40] sm:$0x1]
        %v1035 = vlaneseq
        %v1036 = vshrl.u32 %v1035, 7
        %v1037 = vsub.s32 0, %v1036
        %v1038 = vrot.slane %v1034, %v1037
        %v1039 = vmul.f32 %v1032, %v1038
        %v1040 = vmul.f32 %v1033, %v1038
        %v1041 = vadd.f32 %v1030, %v1039
        %v1042 = vadd.f32 %v1031, %v1040
        %v1043 = vld [vmem:[#allocation2 + $0x43] sm:$0xff]
        %v1044 = vld [vmem:[#allocation2 + $0x4b] sm:$0xff]
        %v1045 = vld [vmem:[#allocation6 + $0x41] sm:$0x1]
        %v1046 = vlaneseq
        %v1047 = vshrl.u32 %v1046, 7
        %v1048 = vsub.s32 0, %v1047
        %v1049 = vrot.slane %v1045, %v1048
        %v1050 = vmul.f32 %v1043, %v1049
        %v1051 = vmul.f32 %v1044, %v1049
        %v1052 = vadd.f32 %v1050, 0.0
        %v1053 = vadd.f32 %v1051, 0.0
        %v1054 = vld [vmem:[#allocation2 + $0x44] sm:$0xff]
        %v1055 = vld [vmem:[#allocation2 + $0x4c] sm:$0xff]
        %v1056 = vld [vmem:[#allocation6 + $0x42] sm:$0x1]
        %v1057 = vlaneseq
        %v1058 = vshrl.u32 %v1057, 7
        %v1059 = vsub.s32 0, %v1058
        %v1060 = vrot.slane %v1056, %v1059
        %v1061 = vmul.f32 %v1054, %v1060
        %v1062 = vmul.f32 %v1055, %v1060
        %v1063 = vadd.f32 %v1052, %v1061
        %v1064 = vadd.f32 %v1053, %v1062
        %v1065 = vld [vmem:[#allocation2 + $0x45] sm:$0xff]
        %v1066 = vld [vmem:[#allocation2 + $0x4d] sm:$0xff]
        %v1067 = vld [vmem:[#allocation6 + $0x43] sm:$0x1]
        %v1068 = vlaneseq
        %v1069 = vshrl.u32 %v1068, 7
        %v1070 = vsub.s32 0, %v1069
        %v1071 = vrot.slane %v1067, %v1070
        %v1072 = vmul.f32 %v1065, %v1071
        %v1073 = vmul.f32 %v1066, %v1071
        %v1074 = vadd.f32 %v1063, %v1072
        %v1075 = vadd.f32 %v1064, %v1073
        %v1076 = vld [vmem:[#allocation2 + $0x46] sm:$0xff]
        %v1077 = vld [vmem:[#allocation2 + $0x4e] sm:$0xff]
        %v1078 = vld [vmem:[#allocation6 + $0x44] sm:$0x1]
        %v1079 = vlaneseq
        %v1080 = vshrl.u32 %v1079, 7
        %v1081 = vsub.s32 0, %v1080
        %v1082 = vrot.slane %v1078, %v1081
        %v1083 = vmul.f32 %v1076, %v1082
        %v1084 = vmul.f32 %v1077, %v1082
        %v1085 = vadd.f32 %v1074, %v1083
        %v1086 = vadd.f32 %v1075, %v1084
        %v1087 = vld [vmem:[#allocation2 + $0x47] sm:$0xff]
        %v1088 = vld [vmem:[#allocation2 + $0x4f] sm:$0xff]
        %v1089 = vld [vmem:[#allocation6 + $0x45] sm:$0x1]
        %v1090 = vlaneseq
        %v1091 = vshrl.u32 %v1090, 7
        %v1092 = vsub.s32 0, %v1091
        %v1093 = vrot.slane %v1089, %v1092
        %v1094 = vmul.f32 %v1087, %v1093
        %v1095 = vmul.f32 %v1088, %v1093
        %v1096 = vadd.f32 %v1085, %v1094
        %v1097 = vadd.f32 %v1086, %v1095
        %v1098 = vld [vmem:[#allocation2 + $0x48] sm:$0xff]
        %v1099 = vld [vmem:[#allocation2 + $0x50] sm:$0xff]
        %v1100 = vld [vmem:[#allocation6 + $0x46] sm:$0x1]
        %v1101 = vlaneseq
        %v1102 = vshrl.u32 %v1101, 7
        %v1103 = vsub.s32 0, %v1102
        %v1104 = vrot.slane %v1100, %v1103
        %v1105 = vmul.f32 %v1098, %v1104
        %v1106 = vmul.f32 %v1099, %v1104
        %v1107 = vadd.f32 %v1096, %v1105
        %v1108 = vadd.f32 %v1097, %v1106
        %v1109 = vld [vmem:[#allocation2 + $0x49] sm:$0xff]
        %v1110 = vld [vmem:[#allocation2 + $0x51] sm:$0xff]
        %v1111 = vld [vmem:[#allocation6 + $0x47] sm:$0x1]
        %v1112 = vlaneseq
        %v1113 = vshrl.u32 %v1112, 7
        %v1114 = vsub.s32 0, %v1113
        %v1115 = vrot.slane %v1111, %v1114
        %v1116 = vmul.f32 %v1109, %v1115
        %v1117 = vmul.f32 %v1110, %v1115
        %v1118 = vadd.f32 %v1107, %v1116
        %v1119 = vadd.f32 %v1108, %v1117
        %v1120 = vld [vmem:[#allocation2 + $0x4a] sm:$0xff]
        %v1121 = vld [vmem:[#allocation2 + $0x52] sm:$0xff]
        %v1122 = vld [vmem:[#allocation6 + $0x48] sm:$0x1]
        %v1123 = vlaneseq
        %v1124 = vshrl.u32 %v1123, 7
        %v1125 = vsub.s32 0, %v1124
        %v1126 = vrot.slane %v1122, %v1125
        %v1127 = vmul.f32 %v1120, %v1126
        %v1128 = vmul.f32 %v1121, %v1126
        %v1129 = vadd.f32 %v1118, %v1127
        %v1130 = vadd.f32 %v1119, %v1128
        %v1131 = vld [vmem:[#allocation2 + $0x53] sm:$0xff]
        %v1132 = vld [vmem:[#allocation6 + $0x49] sm:$0x1]
        %v1133 = vlaneseq
        %v1134 = vshrl.u32 %v1133, 7
        %v1135 = vsub.s32 0, %v1134
        %v1136 = vrot.slane %v1132, %v1135
        %v1137 = vmul.f32 %v1044, %v1136
        %v1138 = vmul.f32 %v1131, %v1136
        %v1139 = vadd.f32 %v1129, %v1137
        %v1140 = vadd.f32 %v1130, %v1138
        %v1141 = vld [vmem:[#allocation2 + $0x54] sm:$0xff]
        %v1142 = vld [vmem:[#allocation6 + $0x4a] sm:$0x1]
        %v1143 = vlaneseq
        %v1144 = vshrl.u32 %v1143, 7
        %v1145 = vsub.s32 0, %v1144
        %v1146 = vrot.slane %v1142, %v1145
        %v1147 = vmul.f32 %v1055, %v1146
        %v1148 = vmul.f32 %v1141, %v1146
        %v1149 = vadd.f32 %v1139, %v1147
        %v1150 = vadd.f32 %v1140, %v1148
        %v1151 = vld [vmem:[#allocation2 + $0x55] sm:$0xff]
        %v1152 = vld [vmem:[#allocation6 + $0x4b] sm:$0x1]
        %v1153 = vlaneseq
        %v1154 = vshrl.u32 %v1153, 7
        %v1155 = vsub.s32 0, %v1154
        %v1156 = vrot.slane %v1152, %v1155
        %v1157 = vmul.f32 %v1066, %v1156
        %v1158 = vmul.f32 %v1151, %v1156
        %v1159 = vadd.f32 %v1149, %v1157
        %v1160 = vadd.f32 %v1150, %v1158
        %v1161 = vld [vmem:[#allocation2 + $0x61] sm:$0xff]
        %v1162 = vld [vmem:[#allocation2 + $0x69] sm:$0xff]
        %v1163 = vld [vmem:[#allocation6 + $0x4c] sm:$0x1]
        %v1164 = vlaneseq
        %v1165 = vshrl.u32 %v1164, 7
        %v1166 = vsub.s32 0, %v1165
        %v1167 = vrot.slane %v1163, %v1166
        %v1168 = vmul.f32 %v1161, %v1167
        %v1169 = vmul.f32 %v1162, %v1167
        %v1170 = vadd.f32 %v1168, 0.0
        %v1171 = vadd.f32 %v1169, 0.0
        %v1172 = vld [vmem:[#allocation2 + $0x62] sm:$0xff]
        %v1173 = vld [vmem:[#allocation2 + $0x6a] sm:$0xff]
        %v1174 = vld [vmem:[#allocation6 + $0x4d] sm:$0x1]
        %v1175 = vlaneseq
        %v1176 = vshrl.u32 %v1175, 7
        %v1177 = vsub.s32 0, %v1176
        %v1178 = vrot.slane %v1174, %v1177
        %v1179 = vmul.f32 %v1172, %v1178
        %v1180 = vmul.f32 %v1173, %v1178
        %v1181 = vadd.f32 %v1170, %v1179
        %v1182 = vadd.f32 %v1171, %v1180
        %v1183 = vld [vmem:[#allocation2 + $0x63] sm:$0xff]
        %v1184 = vld [vmem:[#allocation2 + $0x6b] sm:$0xff]
        %v1185 = vld [vmem:[#allocation6 + $0x4e] sm:$0x1]
        %v1186 = vlaneseq
        %v1187 = vshrl.u32 %v1186, 7
        %v1188 = vsub.s32 0, %v1187
        %v1189 = vrot.slane %v1185, %v1188
        %v1190 = vmul.f32 %v1183, %v1189
        %v1191 = vmul.f32 %v1184, %v1189
        %v1192 = vadd.f32 %v1181, %v1190
        %v1193 = vadd.f32 %v1182, %v1191
        %v1194 = vld [vmem:[#allocation2 + $0x64] sm:$0xff]
        %v1195 = vld [vmem:[#allocation2 + $0x6c] sm:$0xff]
        %v1196 = vld [vmem:[#allocation6 + $0x4f] sm:$0x1]
        %v1197 = vlaneseq
        %v1198 = vshrl.u32 %v1197, 7
        %v1199 = vsub.s32 0, %v1198
        %v1200 = vrot.slane %v1196, %v1199
        %v1201 = vmul.f32 %v1194, %v1200
        %v1202 = vmul.f32 %v1195, %v1200
        %v1203 = vadd.f32 %v1192, %v1201
        %v1204 = vadd.f32 %v1193, %v1202
        %v1205 = vld [vmem:[#allocation2 + $0x65] sm:$0xff]
        %v1206 = vld [vmem:[#allocation2 + $0x6d] sm:$0xff]
        %v1207 = vld [vmem:[#allocation6 + $0x50] sm:$0x1]
        %v1208 = vlaneseq
        %v1209 = vshrl.u32 %v1208, 7
        %v1210 = vsub.s32 0, %v1209
        %v1211 = vrot.slane %v1207, %v1210
        %v1212 = vmul.f32 %v1205, %v1211
        %v1213 = vmul.f32 %v1206, %v1211
        %v1214 = vadd.f32 %v1203, %v1212
        %v1215 = vadd.f32 %v1204, %v1213
        %v1216 = vld [vmem:[#allocation2 + $0x66] sm:$0xff]
        %v1217 = vld [vmem:[#allocation2 + $0x6e] sm:$0xff]
        %v1218 = vld [vmem:[#allocation6 + $0x51] sm:$0x1]
        %v1219 = vlaneseq
        %v1220 = vshrl.u32 %v1219, 7
        %v1221 = vsub.s32 0, %v1220
        %v1222 = vrot.slane %v1218, %v1221
        %v1223 = vmul.f32 %v1216, %v1222
        %v1224 = vmul.f32 %v1217, %v1222
        %v1225 = vadd.f32 %v1214, %v1223
        %v1226 = vadd.f32 %v1215, %v1224
        %v1227 = vld [vmem:[#allocation2 + $0x67] sm:$0xff]
        %v1228 = vld [vmem:[#allocation2 + $0x6f] sm:$0xff]
        %v1229 = vld [vmem:[#allocation6 + $0x52] sm:$0x1]
        %v1230 = vlaneseq
        %v1231 = vshrl.u32 %v1230, 7
        %v1232 = vsub.s32 0, %v1231
        %v1233 = vrot.slane %v1229, %v1232
        %v1234 = vmul.f32 %v1227, %v1233
        %v1235 = vmul.f32 %v1228, %v1233
        %v1236 = vadd.f32 %v1225, %v1234
        %v1237 = vadd.f32 %v1226, %v1235
        %v1238 = vld [vmem:[#allocation2 + $0x68] sm:$0xff]
        %v1239 = vld [vmem:[#allocation2 + $0x70] sm:$0xff]
        %v1240 = vld [vmem:[#allocation6 + $0x53] sm:$0x1]
        %v1241 = vlaneseq
        %v1242 = vshrl.u32 %v1241, 7
        %v1243 = vsub.s32 0, %v1242
        %v1244 = vrot.slane %v1240, %v1243
        %v1245 = vmul.f32 %v1238, %v1244
        %v1246 = vmul.f32 %v1239, %v1244
        %v1247 = vadd.f32 %v1236, %v1245
        %v1248 = vadd.f32 %v1237, %v1246
        %v1249 = vld [vmem:[#allocation2 + $0x71] sm:$0xff]
        %v1250 = vld [vmem:[#allocation6 + $0x54] sm:$0x1]
        %v1251 = vlaneseq
        %v1252 = vshrl.u32 %v1251, 7
        %v1253 = vsub.s32 0, %v1252
        %v1254 = vrot.slane %v1250, %v1253
        %v1255 = vmul.f32 %v1162, %v1254
        %v1256 = vmul.f32 %v1249, %v1254
        %v1257 = vadd.f32 %v1247, %v1255
        %v1258 = vadd.f32 %v1248, %v1256
        %v1259 = vld [vmem:[#allocation2 + $0x72] sm:$0xff]
        %v1260 = vld [vmem:[#allocation6 + $0x55] sm:$0x1]
        %v1261 = vlaneseq
        %v1262 = vshrl.u32 %v1261, 7
        %v1263 = vsub.s32 0, %v1262
        %v1264 = vrot.slane %v1260, %v1263
        %v1265 = vmul.f32 %v1173, %v1264
        %v1266 = vmul.f32 %v1259, %v1264
        %v1267 = vadd.f32 %v1257, %v1265
        %v1268 = vadd.f32 %v1258, %v1266
        %v1269 = vld [vmem:[#allocation2 + $0x73] sm:$0xff]
        %v1270 = vld [vmem:[#allocation6 + $0x56] sm:$0x1]
        %v1271 = vlaneseq
        %v1272 = vshrl.u32 %v1271, 7
        %v1273 = vsub.s32 0, %v1272
        %v1274 = vrot.slane %v1270, %v1273
        %v1275 = vmul.f32 %v1184, %v1274
        %v1276 = vmul.f32 %v1269, %v1274
        %v1277 = vadd.f32 %v1267, %v1275
        %v1278 = vadd.f32 %v1268, %v1276
        %v1279 = vld [vmem:[#allocation2 + $0x74] sm:$0xff]
        %v1280 = vld [vmem:[#allocation6 + $0x57] sm:$0x1]
        %v1281 = vlaneseq
        %v1282 = vshrl.u32 %v1281, 7
        %v1283 = vsub.s32 0, %v1282
        %v1284 = vrot.slane %v1280, %v1283
        %v1285 = vmul.f32 %v1195, %v1284
        %v1286 = vmul.f32 %v1279, %v1284
        %v1287 = vadd.f32 %v1277, %v1285
        %v1288 = vadd.f32 %v1278, %v1286
        %v1289 = vld [vmem:[#allocation2 + $0x75] sm:$0xff]
        %v1290 = vld [vmem:[#allocation6 + $0x58] sm:$0x1]
        %v1291 = vlaneseq
        %v1292 = vshrl.u32 %v1291, 7
        %v1293 = vsub.s32 0, %v1292
        %v1294 = vrot.slane %v1290, %v1293
        %v1295 = vmul.f32 %v1206, %v1294
        %v1296 = vmul.f32 %v1289, %v1294
        %v1297 = vadd.f32 %v1287, %v1295
        %v1298 = vadd.f32 %v1288, %v1296
        %v1299 = vld [vmem:[#allocation2 + $0x76] sm:$0xff]
        %v1300 = vld [vmem:[#allocation6 + $0x59] sm:$0x1]
        %v1301 = vlaneseq
        %v1302 = vshrl.u32 %v1301, 7
        %v1303 = vsub.s32 0, %v1302
        %v1304 = vrot.slane %v1300, %v1303
        %v1305 = vmul.f32 %v1217, %v1304
        %v1306 = vmul.f32 %v1299, %v1304
        %v1307 = vadd.f32 %v1297, %v1305
        %v1308 = vadd.f32 %v1298, %v1306
        %v1309 = vld [vmem:[#allocation2 + $0x77] sm:$0xff]
        %v1310 = vld [vmem:[#allocation6 + $0x5a] sm:$0x1]
        %v1311 = vlaneseq
        %v1312 = vshrl.u32 %v1311, 7
        %v1313 = vsub.s32 0, %v1312
        %v1314 = vrot.slane %v1310, %v1313
        %v1315 = vmul.f32 %v1228, %v1314
        %v1316 = vmul.f32 %v1309, %v1314
        %v1317 = vadd.f32 %v1307, %v1315
        %v1318 = vadd.f32 %v1308, %v1316
        %v1319 = vld [vmem:[#allocation8 + $0x4] sm:$0x1]
        %v1320 = vlaneseq
        %v1321 = vshrl.u32 %v1320, 7
        %v1322 = vsub.s32 0, %v1321
        %v1323 = vrot.slane %v1319, %v1322
        %v1324 = vadd.f32 %v590, %v1323
        %v1325 = vadd.f32 %v591, %v1323
        %v1326 = vadd.f32 %v1324, %v1041
        %v1327 = vadd.f32 %v1325, %v1042
        %v1328 = vadd.f32 %v1326, %v1159
        %v1329 = vadd.f32 %v1327, %v1160
        %v1330 = vadd.f32 %v1328, %v1317
        %v1331 = vadd.f32 %v1329, %v1318
        %v1332 = vld [vmem:[#allocation9] sm:$0xff]
        %v1333 = vld [vmem:[#allocation9 + $0x8] sm:$0xff]
        %v1334 = vld [vmem:[#allocation9 + $0x10] sm:$0xff]
        %v1335 = vld [vmem:[#allocation9 + $0x18] sm:$0xff]
        %v1336 = vld [vmem:[#allocation9 + $0x20] sm:$0xff]
        %v1337 = vld [vmem:[#allocation9 + $0x28] sm:$0xff]
        %v1338 = vld [vmem:[#allocation9 + $0x30] sm:$0xff]
        %v1339 = vld [vmem:[#allocation9 + $0x38] sm:$0xff]
        %v1340 = vld [vmem:[#allocation9 + $0x40] sm:$0xff]
        %v1341 = vld [vmem:[#allocation9 + $0x48] sm:$0xff]
        %v1342 = vld [vmem:[#allocation9 + $0x50] sm:$0xff]
        %v1343 = vld [vmem:[#allocation9 + $0x58] sm:$0xff]
        %v1344 = vld [vmem:[#allocation9 + $0x60] sm:$0xff]
        %v1345 = vld [vmem:[#allocation9 + $0x68] sm:$0xff]
        %v1346 = vld [vmem:[#allocation9 + $0x70] sm:$0xff]
        %v1347 = vld [vmem:[#allocation9 + $0x78] sm:$0xff]
        %v1348 = vld [vmem:[#allocation8 + $0x5] sm:$0x1]
        %v1349 = vlaneseq
        %v1350 = vshrl.u32 %v1349, 7
        %v1351 = vsub.s32 0, %v1350
        %v1352 = vrot.slane %v1348, %v1351
        %1353 = vmatprep.subr.mxu0 0.0
        %1354 = vmatpush1.msra.mxu0 %v1332
        %1355 = vmatprep.subr.mxu0 0.0
        %1356 = vmatpush1.msra.mxu0 %v1333
        %1357 = vmatprep.subr.mxu0 0.0
        %1358 = vmatpush1.msra.mxu0 %v1334
        %1359 = vmatprep.subr.mxu0 0.0
        %1360 = vmatpush1.msra.mxu0 %v1335
        %1361 = vmatprep.subr.mxu0 0.0
        %1362 = vmatpush1.msra.mxu0 %v1336
        %1363 = vmatprep.subr.mxu0 0.0
        %1364 = vmatpush1.msra.mxu0 %v1337
        %1365 = vmatprep.subr.mxu0 0.0
        %1366 = vmatpush1.msra.mxu0 %v1338
        %1367 = vmatprep.subr.mxu0 0.0
        %1368 = vmatpush1.msra.mxu0 %v1339
        %1369 = vmatprep.subr.mxu0 0.0
        %1370 = vmatpush1.msra.mxu0 %v1340
        %1371 = vmatprep.subr.mxu0 0.0
        %1372 = vmatpush1.msra.mxu0 %v1341
        %1373 = vmatprep.subr.mxu0 0.0
        %1374 = vmatpush1.msra.mxu0 %v1342
        %1375 = vmatprep.subr.mxu0 0.0
        %1376 = vmatpush1.msra.mxu0 %v1343
        %1377 = vmatprep.subr.mxu0 0.0
        %1378 = vmatpush1.msra.mxu0 %v1344
        %1379 = vmatprep.subr.mxu0 0.0
        %1380 = vmatpush1.msra.mxu0 %v1345
        %1381 = vmatprep.subr.mxu0 0.0
        %1382 = vmatpush1.msra.mxu0 %v1346
        %1383 = vmatprep.subr.mxu0 0.0
        %1384 = vmatpush1.msra.mxu0 %v1347
        %1385 = vmatprep.subr.mxu0 0.0
        %1386 = vmatpush1.msra.mxu0 0.0
        %1387 = vmatprep.subr.mxu0 0.0
        %1388 = vmatpush1.msra.mxu0 0.0
        %1389 = vmatprep.subr.mxu0 0.0
        %1390 = vmatpush1.msra.mxu0 0.0
        %1391 = vmatprep.subr.mxu0 0.0
        %1392 = vmatpush1.msra.mxu0 0.0
        %1393 = vmatprep.subr.mxu0 0.0
        %1394 = vmatpush1.msra.mxu0 0.0
        %1395 = vmatprep.subr.mxu0 0.0
        %1396 = vmatpush1.msra.mxu0 0.0
        %1397 = vmatprep.subr.mxu0 0.0
        %1398 = vmatpush1.msra.mxu0 0.0
        %1399 = vmatprep.subr.mxu0 0.0
        %1400 = vmatpush1.msra.mxu0 0.0
        %1401 = vmatprep.subr.mxu0 0.0
        %1402 = vmatpush1.msra.mxu0 0.0
        %1403 = vmatprep.subr.mxu0 0.0
        %1404 = vmatpush1.msra.mxu0 0.0
        %1405 = vmatprep.subr.mxu0 0.0
        %1406 = vmatpush1.msra.mxu0 0.0
        %1407 = vmatprep.subr.mxu0 0.0
        %1408 = vmatpush1.msra.mxu0 0.0
        %1409 = vmatprep.subr.mxu0 0.0
        %1410 = vmatpush1.msra.mxu0 0.0
        %1411 = vmatprep.subr.mxu0 0.0
        %1412 = vmatpush1.msra.mxu0 0.0
        %1413 = vmatprep.subr.mxu0 0.0
        %1414 = vmatpush1.msra.mxu0 0.0
        %1415 = vmatprep.subr.mxu0 0.0
        %1416 = vmatpush1.msra.mxu0 0.0
        %1417 = vmatprep.mubr.f32.mxu0 0.0
        %1418 = vmatmul.mubr.f32.gmra.mrb[0].mxu0 %v1330
        %v1419 = vpop.f32.mrb[0].mxu0
        %v1420 = vadd.f32 %v1352, %v1419
        %v1421 = vpop.f32.mrb[0].mxu0
        %1422 = vmatprep.mubr.f32.mxu0 0.0
        %1423 = vmatmul.mubr.f32.gmra.mrb[0].mxu0 %v1331
        %v1424 = vpop.f32.mrb[0].mxu0
        %v1425 = vadd.f32 %v1352, %v1424
        %v1426 = vpop.f32.mrb[0].mxu0
        %1427 = vdwg.mxu0
        %v1428 = vmul.f32 %v1420, %v266
        %v1429 = vmul.f32 %v1425, %v267
        %1430 = vst [vmem:[%s257] sm:$0xff] %v1428
        %1431 = vst [vmem:[%s257 + $0x8] sm:$0xff] %v1429
        %s1432 = sand.u32 %s120, 1
        %s1433 = scalar_lea.sflag [#allocation5], %s1432
        %s1434 = sand.u32 %s120, 1
        %s1435 = smul.addr %s1434, 16
        %s1436 = scalar_lea.vmem [#allocation11], %s1435
        // Predicated region
        $region53: #{tpu_custom_call.1} parent=35 // pred_check
          %p1437 = pneg %p130
        $region54: #{tpu_custom_call.1} parent=35 // pred_check_branch
          %1439 = sbr.rel (%p1437) target = $region56
        $region55: #{tpu_custom_call.1} parent=35 // pred_region
          %s1441 = ssub.s32 256, 256
          %1442 = vsyncadd %s1433, %s1441
          %s1443 = smul.addr %s23, 2
          %s1444 = smul.addr %s1443, 128
          %s1445 = scalar_lea.hbm %s4, %s1444
          %s1446 = sshll.u32 %s1436, 4
          %s1447 = int_to_ptr.vmem [resolvable:$true] %s1446
          %1452 = dma.vmem_to_hbm [thread:$0]  %s1447, 256, %s1445, %s1433, 128, 128, 8
        $region56: #{tpu_custom_call.1} parent=35 // pred_fallthru
          _
      $region36: #{tpu_custom_call.1} parent=5 // pred_fallthru
        _
      %p1453 = scmp.le.s32.totalorder 2, %s18
      // Predicated region
      $region57: #{tpu_custom_call.1} parent=5 // pred_check
        %p1454 = pneg %p1453
      $region58: #{tpu_custom_call.1} parent=5 // pred_check_branch
        %1456 = sbr.rel (%p1454) target = $region60
      $region59: #{tpu_custom_call.1} parent=5 // pred_region
        %s1457 = ssub.s32 %s18, 2
        // Predicated region
        $region61: #{tpu_custom_call.1} parent=59 // pred_check
          %p1458 = pneg %p136
        $region62: #{tpu_custom_call.1} parent=59 // pred_check_branch
          %1460 = sbr.rel (%p1458) target = $region64
        $region63: #{tpu_custom_call.1} parent=59 // pred_region
          %s1461 = sand.u32 %s121, 1
          %s1462 = scalar_lea.sflag [#allocation5], %s1461
          %s1463 = sand.u32 %s121, 1
          %s1464 = smul.addr %s1463, 16
          %s1465 = scalar_lea.vmem [#allocation11], %s1464
          %1466 = dma.done %s1462, 256
        $region64: #{tpu_custom_call.1} parent=59 // pred_fallthru
          _
      $region60: #{tpu_custom_call.1} parent=5 // pred_fallthru
        _
    $region6: #{tpu_custom_call.1} parent=1 // loop_footer
      %s22 = sadd.s32 1, %s18
    $region7: #{tpu_custom_call.1} parent=1 // loop_footer_branch
      %17 = sbr.rel target = $region3
    $region8: #{tpu_custom_call.1} parent=1 // loop_exit
      _
    %1467 = vsyncpa [#allocation4], 1
    %s1468 = scalar_lea.sflag [#allocation4], 1
    %1469 = vsyncpa %s1468, 1
    %1470 = vsyncpa [#allocation7], 1
    %1471 = vsyncpa [#allocation10], 1
    %1472 = vsyncpa [#allocation5], 1
    %s1473 = scalar_lea.sflag [#allocation5], 1
    %1474 = vsyncpa %s1473, 1

</llo_original>
